<compile_context>
chip_gen: v5e
topology: v5e:2x2
jax: 0.10.0
libtpu: 0.0.40
codegen_flags: <defaults>
</compile_context>

<pallas_src>
import functools

import jax
import jax.numpy as jnp
from jax import lax
from jax.experimental import pallas as pl
from jax.experimental.pallas import tpu as pltpu


# ----------------------------------------------------------------------------
# small utilities
# ----------------------------------------------------------------------------

def _round_up(x, m):
    return ((x + m - 1) // m) * m


def _pad_rows(a, rows):
    if a.shape[0] == rows:
        return a
    pad = ((0, rows - a.shape[0]),) + ((0, 0),) * (a.ndim - 1)
    return jnp.pad(a, pad)


def _pad2(a, r, c):
    if a.shape == (r, c):
        return a
    return jnp.pad(a, ((0, r - a.shape[0]), (0, c - a.shape[1])))


def _vmem_limit_bytes():
    # ~40 MiB scoped on v7x (64 MiB physical / TC), up to 64 MiB on v5e/v6e.
    try:
        cap = pltpu.get_tpu_info().vmem_capacity_bytes
        return int(min(64 * 1024 * 1024, cap * 5 // 8))
    except Exception:
        return 40 * 1024 * 1024


_VMEM_LIMIT = _vmem_limit_bytes()


def _pick_tiles(nrows, vocab, hidden):
    """(row_tile, vocab_tile) for the vocab-streamed fused kernels."""
    tv = min(2048, _round_up(vocab, 128))
    nr16 = _round_up(max(nrows, 1), 16)
    # ~4 live [TR,TV] f32 temps + 3 [TR,H] f32 accumulators, budgeted so
    # double-buffered emb tiles + temps fit v7x's per-TC VMEM.
    budget = 24 * 1024 * 1024
    per_row = 4 * tv * 4 + 3 * hidden * 4
    tr = max(16, min(256, (budget // per_row) // 16 * 16))
    tr = min(tr, nr16)
    return tr, tv


# ----------------------------------------------------------------------------
# generic tiled matmul with fused (+bias, tanh) epilogue
#   - accumulates directly into the resident output block (no acc scratch)
# ----------------------------------------------------------------------------

def _matmul_affine_kernel(x_ref, w_ref, b_ref, o_ref, *, activation):
    k = pl.program_id(2)

    @pl.when(k == 0)
    def _():
        o_ref[...] = jnp.zeros_like(o_ref)

    o_ref[...] += lax.dot_general(
        x_ref[...], w_ref[...], (((1,), (0,)), ((), ())),
        preferred_element_type=jnp.float32)

    @pl.when(k == pl.num_programs(2) - 1)
    def _():
        y = o_ref[...] + b_ref[...]
        if activation == "tanh":
            y = jnp.tanh(y)
        o_ref[...] = y


def matmul_affine(x, w, b=None, activation=None):
    """[M,K] @ [K,N] (+bias) (tanh) -> [M,N] f32; bf16 MXU, f32 accumulation."""
    M, K = x.shape
    _, N = w.shape
    tm = min(256, _round_up(M, 16))
    tn = min(256, _round_up(N, 128))
    tk = min(512, _round_up(K, 128))
    Mp, Np, Kp = _round_up(M, tm), _round_up(N, tn), _round_up(K, tk)
    xp = _pad2(x.astype(jnp.float32), Mp, Kp).astype(jnp.bfloat16)
    wp = _pad2(w.astype(jnp.float32), Kp, Np).astype(jnp.bfloat16)
    bias = jnp.zeros((N,), jnp.float32) if b is None else b.astype(jnp.float32)
    bp = jnp.pad(bias, (0, Np - N)).reshape(1, Np)

    out = pl.pallas_call(
        functools.partial(_matmul_affine_kernel, activation=activation),
        out_shape=jax.ShapeDtypeStruct((Mp, Np), jnp.float32),
        grid_spec=pltpu.PrefetchScalarGridSpec(
            num_scalar_prefetch=0,
            grid=(Mp // tm, Np // tn, Kp // tk),
            in_specs=[pl.BlockSpec((tm, tk), lambda i, j, k: (i, k)),
                      pl.BlockSpec((tk, tn), lambda i, j, k: (k, j)),
                      pl.BlockSpec((1, tn), lambda i, j, k: (0, j))],
            out_specs=pl.BlockSpec((tm, tn), lambda i, j, k: (i, j))),
        compiler_params=pltpu.CompilerParams(
            dimension_semantics=("parallel", "parallel", "arbitrary"),
            vmem_limit_bytes=_VMEM_LIMIT),
    )(xp, wp, bp)
    return out[:M, :N]


# ----------------------------------------------------------------------------
# Kernel A: vocab-streamed fused lm_head + CE(nll) + adversarial softmax@emb
#
# Per (row tile r, vocab tile v):
#   logits_v      = x @ emb_v^T                       (unbiased)
#   online LSE over biased logits using shared exp:   exp(l-m) * exp(bias)
#   label logit   accumulated exactly (no exp)
#   online softmax of UNBIASED logits, accumulated as  exp(l-m) @ emb_v
# Last v step emits per-row nll (sans bias[label], added in wrapper) and
# pem = softmax(unbiased logits) @ emb (bf16).  No [N,V] tensor in HBM.
# ----------------------------------------------------------------------------

def _lm_ce_adv_kernel(x_ref, emb_ref, expb_ref, labels_ref,
                      nll_ref, pem_ref,
                      m_ref, lu_ref, lb_ref, lab_ref, acc_ref,
                      *, v_total, tile_v):
    v = pl.program_id(1)

    @pl.when(v == 0)
    def _():
        m_ref[...] = jnp.full_like(m_ref, -1e30)
        lu_ref[...] = jnp.zeros_like(lu_ref)
        lb_ref[...] = jnp.zeros_like(lb_ref)
        lab_ref[...] = jnp.zeros_like(lab_ref)
        acc_ref[...] = jnp.zeros_like(acc_ref)

    x = x_ref[...]                                      # [TR, H]  bf16
    emb = emb_ref[...]                                  # [TV, H]  bf16
    logits = lax.dot_general(x, emb, (((1,), (1,)), ((), ())),
                             preferred_element_type=jnp.float32)   # [TR, TV]
    tr, tv = logits.shape

    col = v * tile_v + lax.broadcasted_iota(jnp.int32, (tr, tv), 1)
    col_ok = col < v_total
    logits = jnp.where(col_ok, logits, -1e30)           # mask padded vocab cols
    is_label = (col == labels_ref[...]).astype(jnp.float32)

    m_old = m_ref[...]
    m_new = jnp.maximum(m_old, jnp.max(logits, axis=-1, keepdims=True))
    alpha = jnp.exp(m_old - m_new)

    eu = jnp.exp(logits - m_new)                        # shared exp pass
    lu_ref[...] = lu_ref[...] * alpha + jnp.sum(eu, axis=-1, keepdims=True)
    lb_ref[...] = lb_ref[...] * alpha + jnp.sum(eu * expb_ref[...],
                                                axis=-1, keepdims=True)
    lab_ref[...] = lab_ref[...] + jnp.sum(is_label * logits,
                                          axis=-1, keepdims=True)
    acc_ref[...] = acc_ref[...] * alpha + lax.dot_general(
        eu.astype(jnp.bfloat16), emb, (((1,), (0,)), ((), ())),
        preferred_element_type=jnp.float32)
    m_ref[...] = m_new

    @pl.when(v == pl.num_programs(1) - 1)
    def _():
        lse_b = m_ref[...] + jnp.log(lb_ref[...])       # exact biased LSE
        nll_ref[...] = lse_b - lab_ref[...]             # - bias[label] in wrapper
        inv_lu = pl.reciprocal(lu_ref[...], approx=True)
        pem_ref[...] = (acc_ref[...] * inv_lu).astype(pem_ref.dtype)


def lm_head_ce_and_adv_grad(seq_bf, emb_bf, expb_row, labels_col,
                            tr, tv, n_rows, v_total, hidden):
    Nrp = seq_bf.shape[0]
    Vp = emb_bf.shape[0]
    nll_rows, pem = pl.pallas_call(
        functools.partial(_lm_ce_adv_kernel, v_total=v_total, tile_v=tv),
        out_shape=(jax.ShapeDtypeStruct((Nrp, 1), jnp.float32),
                   jax.ShapeDtypeStruct((Nrp, hidden), jnp.bfloat16)),
        grid_spec=pltpu.PrefetchScalarGridSpec(
            num_scalar_prefetch=0,
            grid=(Nrp // tr, Vp // tv),
            in_specs=[pl.BlockSpec((tr, hidden), lambda r, v: (r, 0)),
                      pl.BlockSpec((tv, hidden), lambda r, v: (v, 0)),
                      pl.BlockSpec((1, tv), lambda r, v: (0, v)),
                      pl.BlockSpec((tr, 1), lambda r, v: (r, 0))],
            out_specs=(pl.BlockSpec((tr, 1), lambda r, v: (r, 0)),
                       pl.BlockSpec((tr, hidden), lambda r, v: (r, 0))),
            scratch_shapes=[pltpu.VMEM((tr, 1), jnp.float32),
                            pltpu.VMEM((tr, 1), jnp.float32),
                            pltpu.VMEM((tr, 1), jnp.float32),
                            pltpu.VMEM((tr, 1), jnp.float32),
                            pltpu.VMEM((tr, hidden), jnp.float32)]),
        compiler_params=pltpu.CompilerParams(
            dimension_semantics=("parallel", "arbitrary"),
            vmem_limit_bytes=_VMEM_LIMIT),
    )(seq_bf, emb_bf, expb_row, labels_col)
    return nll_rows[:n_rows, 0], pem[:n_rows]


# ----------------------------------------------------------------------------
# Kernel B: vocab-streamed KL-grad of generate_cont_adv
#   grad(pert_hidden) of KL = mask/sum(mask) * (softmax(pert_logits)
#                                               - softmax(lm_logits)) @ emb
# Two independent online softmaxes (pert: unbiased, lm: biased) with their
# own [TR,H] accumulators; combined and masked on the last vocab step.
# ----------------------------------------------------------------------------

def _kl_pos_grad_kernel(pert_ref, seq_ref, emb_ref, bias_ref, mask_ref,
                        grad_ref,
                        mp_ref, lp_ref, accp_ref, mq_ref, lq_ref, accq_ref,
                        *, v_total, tile_v):
    v = pl.program_id(1)

    @pl.when(v == 0)
    def _():
        mp_ref[...] = jnp.full_like(mp_ref, -1e30)
        mq_ref[...] = jnp.full_like(mq_ref, -1e30)
        lp_ref[...] = jnp.zeros_like(lp_ref)
        lq_ref[...] = jnp.zeros_like(lq_ref)
        accp_ref[...] = jnp.zeros_like(accp_ref)
        accq_ref[...] = jnp.zeros_like(accq_ref)

    emb = emb_ref[...]                                  # [TV, H] bf16
    dims_t = (((1,), (1,)), ((), ()))
    dims_n = (((1,), (0,)), ((), ()))
    p_logits = lax.dot_general(pert_ref[...], emb, dims_t,
                               preferred_element_type=jnp.float32)
    q_logits = lax.dot_general(seq_ref[...], emb, dims_t,
                               preferred_element_type=jnp.float32) + bias_ref[...]
    tr, tv = p_logits.shape

    col = v * tile_v + lax.broadcasted_iota(jnp.int32, (tr, tv), 1)
    col_ok = col < v_total
    p_logits = jnp.where(col_ok, p_logits, -1e30)
    q_logits = jnp.where(col_ok, q_logits, -1e30)

    mp_old = mp_ref[...]
    mp_new = jnp.maximum(mp_old, jnp.max(p_logits, axis=-1, keepdims=True))
    ap = jnp.exp(mp_old - mp_new)
    ep = jnp.exp(p_logits - mp_new)
    lp_ref[...] = lp_ref[...] * ap + jnp.sum(ep, axis=-1, keepdims=True)
    accp_ref[...] = accp_ref[...] * ap + lax.dot_general(
        ep.astype(jnp.bfloat16), emb, dims_n, preferred_element_type=jnp.float32)
    mp_ref[...] = mp_new

    mq_old = mq_ref[...]
    mq_new = jnp.maximum(mq_old, jnp.max(q_logits, axis=-1, keepdims=True))
    aq = jnp.exp(mq_old - mq_new)
    eq = jnp.exp(q_logits - mq_new)
    lq_ref[...] = lq_ref[...] * aq + jnp.sum(eq, axis=-1, keepdims=True)
    accq_ref[...] = accq_ref[...] * aq + lax.dot_general(
        eq.astype(jnp.bfloat16), emb, dims_n, preferred_element_type=jnp.float32)
    mq_ref[...] = mq_new

    @pl.when(v == pl.num_programs(1) - 1)
    def _():
        p_em = accp_ref[...] * pl.reciprocal(lp_ref[...], approx=True)
        q_em = accq_ref[...] * pl.reciprocal(lq_ref[...], approx=True)
        grad_ref[...] = ((p_em - q_em) * mask_ref[...]).astype(grad_ref.dtype)


def kl_pos_grad(pert_bf, seq_bf, emb_bf, bias_row, mask_col,
                tr, tv, n_rows, v_total, hidden):
    Nrp = seq_bf.shape[0]
    Vp = emb_bf.shape[0]
    grad = pl.pallas_call(
        functools.partial(_kl_pos_grad_kernel, v_total=v_total, tile_v=tv),
        out_shape=jax.ShapeDtypeStruct((Nrp, hidden), jnp.bfloat16),
        grid_spec=pltpu.PrefetchScalarGridSpec(
            num_scalar_prefetch=0,
            grid=(Nrp // tr, Vp // tv),
            in_specs=[pl.BlockSpec((tr, hidden), lambda r, v: (r, 0)),
                      pl.BlockSpec((tr, hidden), lambda r, v: (r, 0)),
                      pl.BlockSpec((tv, hidden), lambda r, v: (v, 0)),
                      pl.BlockSpec((1, tv), lambda r, v: (0, v)),
                      pl.BlockSpec((tr, 1), lambda r, v: (r, 0))],
            out_specs=pl.BlockSpec((tr, hidden), lambda r, v: (r, 0)),
            scratch_shapes=[pltpu.VMEM((tr, 1), jnp.float32),
                            pltpu.VMEM((tr, 1), jnp.float32),
                            pltpu.VMEM((tr, hidden), jnp.float32),
                            pltpu.VMEM((tr, 1), jnp.float32),
                            pltpu.VMEM((tr, 1), jnp.float32),
                            pltpu.VMEM((tr, hidden), jnp.float32)]),
        compiler_params=pltpu.CompilerParams(
            dimension_semantics=("parallel", "arbitrary"),
            vmem_limit_bytes=_VMEM_LIMIT),
    )(pert_bf, seq_bf, emb_bf, bias_row, mask_col)
    return grad[:n_rows]


# ----------------------------------------------------------------------------
# perturbation:  h + eps * g / (||g|| + 1e-12)   (row-tiled, parallel)
# ----------------------------------------------------------------------------

def _perturb_kernel(h_ref, g_ref, o_ref, *, eps):
    g = g_ref[...].astype(jnp.float32)
    norm = jnp.sqrt(jnp.sum(g * g, axis=-1, keepdims=True))
    inv = pl.reciprocal(norm + 1e-12, approx=True)
    o_ref[...] = h_ref[...] + eps * g * inv


def perturb(h, g, eps):
    Nr, H = h.shape
    tr = min(512, _round_up(Nr, 8))
    Nrp = _round_up(Nr, tr)
    hp = _pad_rows(h.astype(jnp.float32), Nrp)
    gp = _pad_rows(g, Nrp)
    out = pl.pallas_call(
        functools.partial(_perturb_kernel, eps=float(eps)),
        out_shape=jax.ShapeDtypeStruct((Nrp, H), jnp.float32),
        grid_spec=pltpu.PrefetchScalarGridSpec(
            num_scalar_prefetch=0,
            grid=(Nrp // tr,),
            in_specs=[pl.BlockSpec((tr, H), lambda i: (i, 0)),
                      pl.BlockSpec((tr, H), lambda i: (i, 0))],
            out_specs=pl.BlockSpec((tr, H), lambda i: (i, 0))),
        compiler_params=pltpu.CompilerParams(
            dimension_semantics=("parallel",),
            vmem_limit_bytes=_VMEM_LIMIT),
    )(hp, gp)
    return out[:Nr]


# ----------------------------------------------------------------------------
# tiny [B,*] helpers in plain JAX (per perf review: pallas_call overhead
# dominates these ops at small B; XLA fuses them fine)
# ----------------------------------------------------------------------------

def _avg_pool_ref(h, mask):
    length = jnp.maximum(jnp.sum(mask, axis=1, keepdims=True), 1.0)
    return jnp.sum(h * mask[:, :, None], axis=1) / length


def _cos_matrix_ref(a, b):
    an = jnp.linalg.norm(a, axis=-1, keepdims=True)
    bn = jnp.linalg.norm(b, axis=-1, keepdims=True)
    return (a @ b.T) / jnp.maximum(an * bn.T, 1e-8)


def cos_pairs(a, b):
    dot = jnp.sum(a * b, axis=-1, keepdims=True)
    na = jnp.sqrt(jnp.sum(a * a, axis=-1, keepdims=True))
    nb = jnp.sqrt(jnp.sum(b * b, axis=-1, keepdims=True))
    return dot / jnp.maximum(na * nb, 1e-8)


def _ce_ref(logits, labels):
    logp = jax.nn.log_softmax(logits, axis=-1)
    picked = jnp.take_along_axis(logp, labels[:, None], axis=-1)
    return -jnp.mean(picked)


# ----------------------------------------------------------------------------
# parameters + RobustBART forward
# ----------------------------------------------------------------------------

def init_params(key, vocab, hidden):
    ks = jax.random.split(key, 6)
    scale = 0.1
    return dict(
        emb=scale * jax.random.normal(ks[0], (vocab, hidden), jnp.float32),
        W_enc=scale * jax.random.normal(ks[1], (hidden, hidden), jnp.float32),
        b_enc=jnp.zeros((hidden,), jnp.float32),
        W_dec=scale * jax.random.normal(ks[2], (hidden, hidden), jnp.float32),
        b_dec=jnp.zeros((hidden,), jnp.float32),
        W_cross=scale * jax.random.normal(ks[3], (hidden, hidden), jnp.float32),
        final_logits_bias=0.01 * jax.random.normal(ks[4], (vocab,), jnp.float32),
    )


def robust_bart_forward(params, input_ids, attention_mask, decoder_input_ids,
                        decoder_labels, *, tau=0.1, neg_eps=1.0, pos_eps=3.0,
                        pad_token_id=0):
    B, S_enc = input_ids.shape
    _, S_dec = decoder_input_ids.shape
    V, H = params["emb"].shape
    emb = params["emb"]
    bias = params["final_logits_bias"]
    Nr = B * S_dec

    attn_mask_f = attention_mask.astype(jnp.float32)
    dec_mask = jnp.where(decoder_input_ids == pad_token_id, 0.0, 1.0)

    # --- synthetic encoder / decoder ----------------------------------------
    # TODO(synk): pretrained BART encoder/decoder stacks replaced with
    # deterministic single-layer synthetic projections (no checkpoint load).
    enc_emb = emb[input_ids]                                           # [B,Se,H]
    hidden_states = matmul_affine(enc_emb.reshape(B * S_enc, H),
                                  params["W_enc"], params["b_enc"],
                                  activation="tanh").reshape(B, S_enc, H)

    avg_doc = _avg_pool_ref(hidden_states, attn_mask_f)                # [B,H]
    dec_emb = emb[decoder_input_ids]                                   # [B,Sd,H]
    ctx = matmul_affine(avg_doc, params["W_cross"])                    # [B,H]
    dec_lin = matmul_affine(dec_emb.reshape(Nr, H), params["W_dec"],
                            params["b_dec"])                           # bias fused
    # tanh stays in XLA here because the per-batch ctx term varies per row
    seq_flat = jnp.tanh(dec_lin + jnp.repeat(ctx, S_dec, axis=0))      # [N,H]
    sequence_output = seq_flat.reshape(B, S_dec, H)

    # --- shared prepped operands (padded/cast ONCE for kernels A and B) -----
    tr, tv = _pick_tiles(Nr, V, H)
    Nrp = _round_up(Nr, tr)
    Vp = _round_up(V, tv)
    seq_bf = _pad_rows(seq_flat, Nrp).astype(jnp.bfloat16)
    emb_bf = _pad2(emb, Vp, H).astype(jnp.bfloat16)
    bias_row = jnp.pad(bias, (0, Vp - V)).reshape(1, Vp).astype(jnp.float32)
    expb_row = jnp.pad(jnp.exp(bias), (0, Vp - V)).reshape(1, Vp).astype(jnp.float32)

    labels_flat = decoder_labels.reshape(-1)
    labels_col = _pad_rows(labels_flat.reshape(Nr, 1).astype(jnp.int32), Nrp)

    # --- Kernel A: fused lm_head + NLL + adversarial softmax@emb ------------
    nll_rows, pem = lm_head_ce_and_adv_grad(
        seq_bf, emb_bf, expb_row, labels_col, tr, tv, Nr, V, H)
    nll = (jnp.sum(nll_rows) - jnp.sum(bias[labels_flat])) / Nr
    # CE grad of generate_adv (UNBIASED logits, per spec), mean reduction:
    dec_grad = (pem.astype(jnp.float32) - emb[labels_flat]) * (1.0 / Nr)

    # --- pooled representations + similarity matrix --------------------------
    avg_abs = _avg_pool_ref(sequence_output, dec_mask)
    sim_matrix = _cos_matrix_ref(avg_doc, avg_abs)                     # [B,B]

    # --- generate_adv (negative / adversarial decoder hidden) ----------------
    perturbed_dec = perturb(seq_flat, dec_grad, neg_eps).reshape(B, S_dec, H)
    avg_pert = _avg_pool_ref(perturbed_dec, dec_mask)
    adv_sim = cos_pairs(avg_doc, avg_pert)                             # [B,1]

    # --- generate_cont_adv (positive decoder hidden) --------------------------
    def cont_loss_fn(dec_h):
        avg_enc = _avg_pool_ref(hidden_states, attn_mask_f)
        avg_dec = _avg_pool_ref(dec_h, dec_mask)
        logits = _cos_matrix_ref(avg_enc, avg_dec) / tau
        return _ce_ref(logits, jnp.arange(B))

    dec_grad_cont = jax.grad(cont_loss_fn)(sequence_output).reshape(Nr, H)
    perturb_dec_flat = perturb(seq_flat, dec_grad_cont, pos_eps)       # [N,H]
    pert_bf = _pad_rows(perturb_dec_flat, Nrp).astype(jnp.bfloat16)

    # fold the 1/sum(dec_mask) normalization into the mask (no extra [N,H] pass)
    mask_scaled = dec_mask.reshape(Nr, 1) / jnp.maximum(jnp.sum(dec_mask), 1.0)
    mask_col = _pad_rows(mask_scaled.astype(jnp.float32), Nrp)

    kl_grad_h = kl_pos_grad(pert_bf, seq_bf, emb_bf, bias_row, mask_col,
                            tr, tv, Nr, V, H)                          # bf16 [N,H]
    pos_dec_hidden = perturb(perturb_dec_flat, kl_grad_h,
                             -pos_eps).reshape(B, S_dec, H)
    avg_pos_dec = _avg_pool_ref(pos_dec_hidden, dec_mask)
    pos_sim = cos_pairs(avg_doc, avg_pos_dec)                          # [B,1]

    # --- contrastive losses ----------------------------------------------------
    logits_cont = jnp.concatenate([sim_matrix, adv_sim], axis=1) / tau
    identity = jnp.eye(B, dtype=jnp.float32)
    pos_sim_mat = identity * pos_sim
    neg_sim = jnp.where(identity == 1.0, 0.0, sim_matrix)
    new_logits = jnp.concatenate([pos_sim_mat + neg_sim, adv_sim], axis=1)
    labels_b = jnp.arange(B)
    cont_loss = 0.5 * (_ce_ref(logits_cont, labels_b) + _ce_ref(new_logits, labels_b))

    return nll + cont_loss


# ----------------------------------------------------------------------------

if __name__ == "__main__":
    B, S_ENC, S_DEC, H, V = 2, 16, 8, 128, 256
    PAD = 0

    key = jax.random.PRNGKey(0)
    k_par, k_in, k_dec, k_lab = jax.random.split(key, 4)

    params = init_params(k_par, V, H)

    input_ids = jax.random.randint(k_in, (B, S_ENC), 1, V, dtype=jnp.int32)
    attention_mask = jnp.ones((B, S_ENC), jnp.float32)
    attention_mask = attention_mask.at[1, -5:].set(0.0)

    decoder_input_ids = jax.random.randint(k_dec, (B, S_DEC), 1, V, dtype=jnp.int32)
    decoder_input_ids = decoder_input_ids.at[1, -2:].set(PAD)   # pad tail of row 1
    decoder_labels = jax.random.randint(k_lab, (B, S_DEC), 1, V, dtype=jnp.int32)

    loss_fn = jax.jit(functools.partial(robust_bart_forward, pad_token_id=PAD))
    loss = loss_fn(params, input_ids, attention_mask,
                   decoder_input_ids, decoder_labels)
    loss = jax.block_until_ready(loss)
    assert jnp.isfinite(loss), "loss is not finite"
    print("KERNEL_OK")
</pallas_src>

<mosaic_0001>
module attributes {stable_mosaic.version = 11 : i64} {
  func.func @_matmul_affine_kernel(%arg0: i32, %arg1: i32, %arg2: i32, %arg3: memref<32x128xbf16, #tpu.memory_space<vmem>>, %arg4: memref<128x128xbf16, #tpu.memory_space<vmem>>, %arg5: memref<1x128xf32, #tpu.memory_space<vmem>>, %arg6: memref<32x128xf32, #tpu.memory_space<vmem>>) attributes {dimension_semantics = [#tpu.dimension_semantics<parallel>, #tpu.dimension_semantics<parallel>, #tpu.dimension_semantics<arbitrary>], iteration_bounds = array<i64: 1, 1, 1>, scalar_prefetch = 0 : i64, scratch_operands = 0 : i64, tpu.core_type = #tpu.core_type<tc>, window_params = [{transform_indices = @transform_0, window_bounds = array<i64: 32, 128>}, {transform_indices = @transform_1, window_bounds = array<i64: 128, 128>}, {transform_indices = @transform_2, window_bounds = array<i64: 1, 128>}, {transform_indices = @transform_3, window_bounds = array<i64: 32, 128>}]} {
    %c0_i32 = arith.constant 0 : i32
    %0 = arith.cmpi eq, %arg2, %c0_i32 : i32
    %1 = arith.extui %0 : i1 to i32
    %c0_i32_0 = arith.constant 0 : i32
    %2 = arith.cmpi ne, %1, %c0_i32_0 : i32
    scf.if %2 {
      %cst_10 = arith.constant 0.000000e+00 : f32
      %12 = vector.broadcast %cst_10 : f32 to vector<32x128xf32>
      %c0_11 = arith.constant 0 : index
      %c0_12 = arith.constant 0 : index
      %13 = vector.load %arg6[%c0_11, %c0_12] : memref<32x128xf32, #tpu.memory_space<vmem>>, vector<32x128xf32>
      tpu.vector_store %arg6[%c0_11, %c0_12], %12 {strides = array<i32>} : memref<32x128xf32, #tpu.memory_space<vmem>>, vector<32x128xf32>,
    } else {
    }
    %c0 = arith.constant 0 : index
    %c0_1 = arith.constant 0 : index
    %3 = vector.load %arg6[%c0, %c0_1] : memref<32x128xf32, #tpu.memory_space<vmem>>, vector<32x128xf32>
    %c0_2 = arith.constant 0 : index
    %c0_3 = arith.constant 0 : index
    %4 = vector.load %arg3[%c0_2, %c0_3] : memref<32x128xbf16, #tpu.memory_space<vmem>>, vector<32x128xbf16>
    %c0_4 = arith.constant 0 : index
    %c0_5 = arith.constant 0 : index
    %5 = vector.load %arg4[%c0_4, %c0_5] : memref<128x128xbf16, #tpu.memory_space<vmem>>, vector<128x128xbf16>
    %cst = arith.constant dense<0.000000e+00> : vector<32x128xf32>
    %6 = tpu.matmul %4, %5, %cst {dimension_numbers = #tpu.dot_dimension_numbers<[1], [0], [0], [1], [0, 0, 1, 1], [], []>} : vector<32x128xbf16>, vector<128x128xbf16>, vector<32x128xf32> -> vector<32x128xf32>
    %7 = arith.addf %3, %6 : vector<32x128xf32>
    %c0_6 = arith.constant 0 : index
    %c0_7 = arith.constant 0 : index
    %8 = vector.load %arg6[%c0_6, %c0_7] : memref<32x128xf32, #tpu.memory_space<vmem>>, vector<32x128xf32>
    tpu.vector_store %arg6[%c0_6, %c0_7], %7 {strides = array<i32>} : memref<32x128xf32, #tpu.memory_space<vmem>>, vector<32x128xf32>,
    %c0_i32_8 = arith.constant 0 : i32
    %9 = arith.cmpi eq, %arg2, %c0_i32_8 : i32
    %10 = arith.extui %9 : i1 to i32
    %c0_i32_9 = arith.constant 0 : i32
    %11 = arith.cmpi ne, %10, %c0_i32_9 : i32
    scf.if %11 {
      %c0_10 = arith.constant 0 : index
      %c0_11 = arith.constant 0 : index
      %12 = vector.load %arg6[%c0_10, %c0_11] : memref<32x128xf32, #tpu.memory_space<vmem>>, vector<32x128xf32>
      %c0_12 = arith.constant 0 : index
      %c0_13 = arith.constant 0 : index
      %13 = vector.load %arg5[%c0_12, %c0_13] : memref<1x128xf32, #tpu.memory_space<vmem>>, vector<1x128xf32>
      %14 = vector.broadcast %13 : vector<1x128xf32> to vector<32x128xf32>
      %15 = arith.addf %12, %14 : vector<32x128xf32>
      %16 = math.tanh %15 : vector<32x128xf32>
      %c0_14 = arith.constant 0 : index
      %c0_15 = arith.constant 0 : index
      %17 = vector.load %arg6[%c0_14, %c0_15] : memref<32x128xf32, #tpu.memory_space<vmem>>, vector<32x128xf32>
      tpu.vector_store %arg6[%c0_14, %c0_15], %16 {strides = array<i32>} : memref<32x128xf32, #tpu.memory_space<vmem>>, vector<32x128xf32>,
    } else {
    }
    return
  }
  func.func @transform_0(%arg0: i32, %arg1: i32, %arg2: i32) -> (i32, i32) {
    %c0_i32 = arith.constant 0 : i32
    return %arg0, %arg2 : i32, i32
  }
  func.func @transform_1(%arg0: i32, %arg1: i32, %arg2: i32) -> (i32, i32) {
    %c0_i32 = arith.constant 0 : i32
    return %arg2, %arg1 : i32, i32
  }
  func.func @transform_2(%arg0: i32, %arg1: i32, %arg2: i32) -> (i32, i32) {
    %c0_i32 = arith.constant 0 : i32
    %c0_i32_0 = arith.constant 0 : i32
    return %c0_i32, %arg1 : i32, i32
  }
  func.func @transform_3(%arg0: i32, %arg1: i32, %arg2: i32) -> (i32, i32) {
    %c0_i32 = arith.constant 0 : i32
    return %arg0, %arg1 : i32, i32
  }
}

module attributes {stable_mosaic.version = 11 : i64} {
  func.func @_matmul_affine_kernel(%arg0: i32, %arg1: i32, %arg2: i32, %arg3: memref<16x128xbf16, #tpu.memory_space<vmem>>, %arg4: memref<128x128xbf16, #tpu.memory_space<vmem>>, %arg5: memref<1x128xf32, #tpu.memory_space<vmem>>, %arg6: memref<16x128xf32, #tpu.memory_space<vmem>>) attributes {dimension_semantics = [#tpu.dimension_semantics<parallel>, #tpu.dimension_semantics<parallel>, #tpu.dimension_semantics<arbitrary>], iteration_bounds = array<i64: 1, 1, 1>, scalar_prefetch = 0 : i64, scratch_operands = 0 : i64, tpu.core_type = #tpu.core_type<tc>, window_params = [{transform_indices = @transform_0, window_bounds = array<i64: 16, 128>}, {transform_indices = @transform_1, window_bounds = array<i64: 128, 128>}, {transform_indices = @transform_2, window_bounds = array<i64: 1, 128>}, {transform_indices = @transform_3, window_bounds = array<i64: 16, 128>}]} {
    %c0_i32 = arith.constant 0 : i32
    %0 = arith.cmpi eq, %arg2, %c0_i32 : i32
    %1 = arith.extui %0 : i1 to i32
    %c0_i32_0 = arith.constant 0 : i32
    %2 = arith.cmpi ne, %1, %c0_i32_0 : i32
    scf.if %2 {
      %cst_10 = arith.constant 0.000000e+00 : f32
      %12 = vector.broadcast %cst_10 : f32 to vector<16x128xf32>
      %c0_11 = arith.constant 0 : index
      %c0_12 = arith.constant 0 : index
      %13 = vector.load %arg6[%c0_11, %c0_12] : memref<16x128xf32, #tpu.memory_space<vmem>>, vector<16x128xf32>
      tpu.vector_store %arg6[%c0_11, %c0_12], %12 {strides = array<i32>} : memref<16x128xf32, #tpu.memory_space<vmem>>, vector<16x128xf32>,
    } else {
    }
    %c0 = arith.constant 0 : index
    %c0_1 = arith.constant 0 : index
    %3 = vector.load %arg6[%c0, %c0_1] : memref<16x128xf32, #tpu.memory_space<vmem>>, vector<16x128xf32>
    %c0_2 = arith.constant 0 : index
    %c0_3 = arith.constant 0 : index
    %4 = vector.load %arg3[%c0_2, %c0_3] : memref<16x128xbf16, #tpu.memory_space<vmem>>, vector<16x128xbf16>
    %c0_4 = arith.constant 0 : index
    %c0_5 = arith.constant 0 : index
    %5 = vector.load %arg4[%c0_4, %c0_5] : memref<128x128xbf16, #tpu.memory_space<vmem>>, vector<128x128xbf16>
    %cst = arith.constant dense<0.000000e+00> : vector<16x128xf32>
    %6 = tpu.matmul %4, %5, %cst {dimension_numbers = #tpu.dot_dimension_numbers<[1], [0], [0], [1], [0, 0, 1, 1], [], []>} : vector<16x128xbf16>, vector<128x128xbf16>, vector<16x128xf32> -> vector<16x128xf32>
    %7 = arith.addf %3, %6 : vector<16x128xf32>
    %c0_6 = arith.constant 0 : index
    %c0_7 = arith.constant 0 : index
    %8 = vector.load %arg6[%c0_6, %c0_7] : memref<16x128xf32, #tpu.memory_space<vmem>>, vector<16x128xf32>
    tpu.vector_store %arg6[%c0_6, %c0_7], %7 {strides = array<i32>} : memref<16x128xf32, #tpu.memory_space<vmem>>, vector<16x128xf32>,
    %c0_i32_8 = arith.constant 0 : i32
    %9 = arith.cmpi eq, %arg2, %c0_i32_8 : i32
    %10 = arith.extui %9 : i1 to i32
    %c0_i32_9 = arith.constant 0 : i32
    %11 = arith.cmpi ne, %10, %c0_i32_9 : i32
    scf.if %11 {
      %c0_10 = arith.constant 0 : index
      %c0_11 = arith.constant 0 : index
      %12 = vector.load %arg6[%c0_10, %c0_11] : memref<16x128xf32, #tpu.memory_space<vmem>>, vector<16x128xf32>
      %c0_12 = arith.constant 0 : index
      %c0_13 = arith.constant 0 : index
      %13 = vector.load %arg5[%c0_12, %c0_13] : memref<1x128xf32, #tpu.memory_space<vmem>>, vector<1x128xf32>
      %14 = vector.broadcast %13 : vector<1x128xf32> to vector<16x128xf32>
      %15 = arith.addf %12, %14 : vector<16x128xf32>
      %c0_14 = arith.constant 0 : index
      %c0_15 = arith.constant 0 : index
      %16 = vector.load %arg6[%c0_14, %c0_15] : memref<16x128xf32, #tpu.memory_space<vmem>>, vector<16x128xf32>
      tpu.vector_store %arg6[%c0_14, %c0_15], %15 {strides = array<i32>} : memref<16x128xf32, #tpu.memory_space<vmem>>, vector<16x128xf32>,
    } else {
    }
    return
  }
  func.func @transform_0(%arg0: i32, %arg1: i32, %arg2: i32) -> (i32, i32) {
    %c0_i32 = arith.constant 0 : i32
    return %arg0, %arg2 : i32, i32
  }
  func.func @transform_1(%arg0: i32, %arg1: i32, %arg2: i32) -> (i32, i32) {
    %c0_i32 = arith.constant 0 : i32
    return %arg2, %arg1 : i32, i32
  }
  func.func @transform_2(%arg0: i32, %arg1: i32, %arg2: i32) -> (i32, i32) {
    %c0_i32 = arith.constant 0 : i32
    %c0_i32_0 = arith.constant 0 : i32
    return %c0_i32, %arg1 : i32, i32
  }
  func.func @transform_3(%arg0: i32, %arg1: i32, %arg2: i32) -> (i32, i32) {
    %c0_i32 = arith.constant 0 : i32
    return %arg0, %arg1 : i32, i32
  }
}

module attributes {stable_mosaic.version = 11 : i64} {
  func.func @_perturb_kernel(%arg0: i32, %arg1: memref<16x128xf32, #tpu.memory_space<vmem>>, %arg2: memref<16x128xf32, #tpu.memory_space<vmem>>, %arg3: memref<16x128xf32, #tpu.memory_space<vmem>>) attributes {dimension_semantics = [#tpu.dimension_semantics<parallel>], iteration_bounds = array<i64: 1>, scalar_prefetch = 0 : i64, scratch_operands = 0 : i64, tpu.core_type = #tpu.core_type<tc>, window_params = [{transform_indices = @transform_0, window_bounds = array<i64: 16, 128>}, {transform_indices = @transform_1, window_bounds = array<i64: 16, 128>}, {transform_indices = @transform_2, window_bounds = array<i64: 16, 128>}]} {
    %c0 = arith.constant 0 : index
    %c0_0 = arith.constant 0 : index
    %0 = vector.load %arg2[%c0, %c0_0] : memref<16x128xf32, #tpu.memory_space<vmem>>, vector<16x128xf32>
    %1 = arith.mulf %0, %0 : vector<16x128xf32>
    %cst = arith.constant dense<0.000000e+00> : vector<16xf32>
    %2 = vector.multi_reduction <add>, %1, %cst [1] : vector<16x128xf32> to vector<16xf32>
    %3 = vector.shape_cast %2 : vector<16xf32> to vector<16x1xf32>
    %4 = math.sqrt %3 : vector<16x1xf32>
    %cst_1 = arith.constant 9.99999996E-13 : f32
    %5 = vector.broadcast %cst_1 : f32 to vector<16x1xf32>
    %6 = arith.addf %4, %5 : vector<16x1xf32>
    %7 = tpu.reciprocal %6 {approx = true} : vector<16x1xf32> -> vector<16x1xf32>
    %c0_2 = arith.constant 0 : index
    %c0_3 = arith.constant 0 : index
    %8 = vector.load %arg1[%c0_2, %c0_3] : memref<16x128xf32, #tpu.memory_space<vmem>>, vector<16x128xf32>
    %cst_4 = arith.constant 3.000000e+00 : f32
    %9 = vector.broadcast %cst_4 : f32 to vector<16x128xf32>
    %10 = arith.mulf %9, %0 : vector<16x128xf32>
    %11 = vector.broadcast %7 : vector<16x1xf32> to vector<16x128xf32>
    %12 = arith.mulf %10, %11 : vector<16x128xf32>
    %13 = arith.addf %8, %12 : vector<16x128xf32>
    %c0_5 = arith.constant 0 : index
    %c0_6 = arith.constant 0 : index
    %14 = vector.load %arg3[%c0_5, %c0_6] : memref<16x128xf32, #tpu.memory_space<vmem>>, vector<16x128xf32>
    tpu.vector_store %arg3[%c0_5, %c0_6], %13 {strides = array<i32>} : memref<16x128xf32, #tpu.memory_space<vmem>>, vector<16x128xf32>,
    return
  }
  func.func @transform_0(%arg0: i32) -> (i32, i32) {
    %c0_i32 = arith.constant 0 : i32
    %c0_i32_0 = arith.constant 0 : i32
    return %arg0, %c0_i32 : i32, i32
  }
  func.func @transform_1(%arg0: i32) -> (i32, i32) {
    %c0_i32 = arith.constant 0 : i32
    %c0_i32_0 = arith.constant 0 : i32
    return %arg0, %c0_i32 : i32, i32
  }
  func.func @transform_2(%arg0: i32) -> (i32, i32) {
    %c0_i32 = arith.constant 0 : i32
    %c0_i32_0 = arith.constant 0 : i32
    return %arg0, %c0_i32 : i32, i32
  }
}

module attributes {stable_mosaic.version = 11 : i64} {
  func.func @_perturb_kernel(%arg0: i32, %arg1: memref<16x128xf32, #tpu.memory_space<vmem>>, %arg2: memref<16x128xbf16, #tpu.memory_space<vmem>>, %arg3: memref<16x128xf32, #tpu.memory_space<vmem>>) attributes {dimension_semantics = [#tpu.dimension_semantics<parallel>], iteration_bounds = array<i64: 1>, scalar_prefetch = 0 : i64, scratch_operands = 0 : i64, tpu.core_type = #tpu.core_type<tc>, window_params = [{transform_indices = @transform_0, window_bounds = array<i64: 16, 128>}, {transform_indices = @transform_1, window_bounds = array<i64: 16, 128>}, {transform_indices = @transform_2, window_bounds = array<i64: 16, 128>}]} {
    %c0 = arith.constant 0 : index
    %c0_0 = arith.constant 0 : index
    %0 = vector.load %arg2[%c0, %c0_0] : memref<16x128xbf16, #tpu.memory_space<vmem>>, vector<16x128xbf16>
    %1 = arith.extf %0 : vector<16x128xbf16> to vector<16x128xf32>
    %2 = arith.mulf %1, %1 : vector<16x128xf32>
    %cst = arith.constant dense<0.000000e+00> : vector<16xf32>
    %3 = vector.multi_reduction <add>, %2, %cst [1] : vector<16x128xf32> to vector<16xf32>
    %4 = vector.shape_cast %3 : vector<16xf32> to vector<16x1xf32>
    %5 = math.sqrt %4 : vector<16x1xf32>
    %cst_1 = arith.constant 9.99999996E-13 : f32
    %6 = vector.broadcast %cst_1 : f32 to vector<16x1xf32>
    %7 = arith.addf %5, %6 : vector<16x1xf32>
    %8 = tpu.reciprocal %7 {approx = true} : vector<16x1xf32> -> vector<16x1xf32>
    %c0_2 = arith.constant 0 : index
    %c0_3 = arith.constant 0 : index
    %9 = vector.load %arg1[%c0_2, %c0_3] : memref<16x128xf32, #tpu.memory_space<vmem>>, vector<16x128xf32>
    %cst_4 = arith.constant -3.000000e+00 : f32
    %10 = vector.broadcast %cst_4 : f32 to vector<16x128xf32>
    %11 = arith.mulf %10, %1 : vector<16x128xf32>
    %12 = vector.broadcast %8 : vector<16x1xf32> to vector<16x128xf32>
    %13 = arith.mulf %11, %12 : vector<16x128xf32>
    %14 = arith.addf %9, %13 : vector<16x128xf32>
    %c0_5 = arith.constant 0 : index
    %c0_6 = arith.constant 0 : index
    %15 = vector.load %arg3[%c0_5, %c0_6] : memref<16x128xf32, #tpu.memory_space<vmem>>, vector<16x128xf32>
    tpu.vector_store %arg3[%c0_5, %c0_6], %14 {strides = array<i32>} : memref<16x128xf32, #tpu.memory_space<vmem>>, vector<16x128xf32>,
    return
  }
  func.func @transform_0(%arg0: i32) -> (i32, i32) {
    %c0_i32 = arith.constant 0 : i32
    %c0_i32_0 = arith.constant 0 : i32
    return %arg0, %c0_i32 : i32, i32
  }
  func.func @transform_1(%arg0: i32) -> (i32, i32) {
    %c0_i32 = arith.constant 0 : i32
    %c0_i32_0 = arith.constant 0 : i32
    return %arg0, %c0_i32 : i32, i32
  }
  func.func @transform_2(%arg0: i32) -> (i32, i32) {
    %c0_i32 = arith.constant 0 : i32
    %c0_i32_0 = arith.constant 0 : i32
    return %arg0, %c0_i32 : i32, i32
  }
}

module attributes {stable_mosaic.version = 11 : i64} {
  func.func @_lm_ce_adv_kernel(%arg0: i32, %arg1: i32, %arg2: memref<16x128xbf16, #tpu.memory_space<vmem>>, %arg3: memref<256x128xbf16, #tpu.memory_space<vmem>>, %arg4: memref<1x256xf32, #tpu.memory_space<vmem>>, %arg5: memref<16x1xi32, #tpu.memory_space<vmem>>, %arg6: memref<16x1xf32, #tpu.memory_space<vmem>>, %arg7: memref<16x128xbf16, #tpu.memory_space<vmem>>, %arg8: memref<16x1xf32, #tpu.memory_space<vmem>>, %arg9: memref<16x1xf32, #tpu.memory_space<vmem>>, %arg10: memref<16x1xf32, #tpu.memory_space<vmem>>, %arg11: memref<16x1xf32, #tpu.memory_space<vmem>>, %arg12: memref<16x128xf32, #tpu.memory_space<vmem>>) attributes {dimension_semantics = [#tpu.dimension_semantics<parallel>, #tpu.dimension_semantics<arbitrary>], iteration_bounds = array<i64: 1, 1>, scalar_prefetch = 0 : i64, scratch_operands = 5 : i64, tpu.core_type = #tpu.core_type<tc>, window_params = [{transform_indices = @transform_0, window_bounds = array<i64: 16, 128>}, {transform_indices = @transform_1, window_bounds = array<i64: 256, 128>}, {transform_indices = @transform_2, window_bounds = array<i64: 1, 256>}, {transform_indices = @transform_3, window_bounds = array<i64: 16, 1>}, {transform_indices = @transform_4, window_bounds = array<i64: 16, 1>}, {transform_indices = @transform_5, window_bounds = array<i64: 16, 128>}]} {
    %c0_i32 = arith.constant 0 : i32
    %0 = arith.cmpi eq, %arg1, %c0_i32 : i32
    %1 = arith.extui %0 : i1 to i32
    %c0_i32_0 = arith.constant 0 : i32
    %2 = arith.cmpi ne, %1, %c0_i32_0 : i32
    scf.if %2 {
      %cst_37 = arith.constant -1.000000e+30 : f32
      %60 = vector.broadcast %cst_37 : f32 to vector<16x1xf32>
      %c0_38 = arith.constant 0 : index
      %c0_39 = arith.constant 0 : index
      %61 = vector.load %arg8[%c0_38, %c0_39] : memref<16x1xf32, #tpu.memory_space<vmem>>, vector<16x1xf32>
      tpu.vector_store %arg8[%c0_38, %c0_39], %60 {strides = array<i32>} : memref<16x1xf32, #tpu.memory_space<vmem>>, vector<16x1xf32>,
      %cst_40 = arith.constant 0.000000e+00 : f32
      %62 = vector.broadcast %cst_40 : f32 to vector<16x1xf32>
      %c0_41 = arith.constant 0 : index
      %c0_42 = arith.constant 0 : index
      %63 = vector.load %arg9[%c0_41, %c0_42] : memref<16x1xf32, #tpu.memory_space<vmem>>, vector<16x1xf32>
      tpu.vector_store %arg9[%c0_41, %c0_42], %62 {strides = array<i32>} : memref<16x1xf32, #tpu.memory_space<vmem>>, vector<16x1xf32>,
      %cst_43 = arith.constant 0.000000e+00 : f32
      %64 = vector.broadcast %cst_43 : f32 to vector<16x1xf32>
      %c0_44 = arith.constant 0 : index
      %c0_45 = arith.constant 0 : index
      %65 = vector.load %arg10[%c0_44, %c0_45] : memref<16x1xf32, #tpu.memory_space<vmem>>, vector<16x1xf32>
      tpu.vector_store %arg10[%c0_44, %c0_45], %64 {strides = array<i32>} : memref<16x1xf32, #tpu.memory_space<vmem>>, vector<16x1xf32>,
      %cst_46 = arith.constant 0.000000e+00 : f32
      %66 = vector.broadcast %cst_46 : f32 to vector<16x1xf32>
      %c0_47 = arith.constant 0 : index
      %c0_48 = arith.constant 0 : index
      %67 = vector.load %arg11[%c0_47, %c0_48] : memref<16x1xf32, #tpu.memory_space<vmem>>, vector<16x1xf32>
      tpu.vector_store %arg11[%c0_47, %c0_48], %66 {strides = array<i32>} : memref<16x1xf32, #tpu.memory_space<vmem>>, vector<16x1xf32>,
      %cst_49 = arith.constant 0.000000e+00 : f32
      %68 = vector.broadcast %cst_49 : f32 to vector<16x128xf32>
      %c0_50 = arith.constant 0 : index
      %c0_51 = arith.constant 0 : index
      %69 = vector.load %arg12[%c0_50, %c0_51] : memref<16x128xf32, #tpu.memory_space<vmem>>, vector<16x128xf32>
      tpu.vector_store %arg12[%c0_50, %c0_51], %68 {strides = array<i32>} : memref<16x128xf32, #tpu.memory_space<vmem>>, vector<16x128xf32>,
    } else {
    }
    %c0 = arith.constant 0 : index
    %c0_1 = arith.constant 0 : index
    %3 = vector.load %arg2[%c0, %c0_1] : memref<16x128xbf16, #tpu.memory_space<vmem>>, vector<16x128xbf16>
    %c0_2 = arith.constant 0 : index
    %c0_3 = arith.constant 0 : index
    %4 = vector.load %arg3[%c0_2, %c0_3] : memref<256x128xbf16, #tpu.memory_space<vmem>>, vector<256x128xbf16>
    %cst = arith.constant dense<0.000000e+00> : vector<16x256xf32>
    %5 = tpu.matmul %3, %4, %cst {dimension_numbers = #tpu.dot_dimension_numbers<[1], [1], [0], [0], [0, 0, 1, 0], [], []>} : vector<16x128xbf16>, vector<256x128xbf16>, vector<16x256xf32> -> vector<16x256xf32>
    %c256_i32 = arith.constant 256 : i32
    %6 = arith.muli %arg1, %c256_i32 : i32
    %7 = tpu.iota {dimensions = array<i32: 1>} : vector<16x256xi32>
    %8 = vector.broadcast %6 : i32 to vector<16x256xi32>
    %9 = arith.addi %8, %7 : vector<16x256xi32>
    %c256_i32_4 = arith.constant 256 : i32
    %10 = vector.broadcast %c256_i32_4 : i32 to vector<16x256xi32>
    %11 = arith.cmpi slt, %9, %10 : vector<16x256xi32>
    %cst_5 = arith.constant -1.000000e+30 : f32
    %12 = vector.broadcast %cst_5 : f32 to vector<16x256xf32>
    %13 = arith.select %11, %5, %12 : vector<16x256xi1>, vector<16x256xf32>
    %c0_6 = arith.constant 0 : index
    %c0_7 = arith.constant 0 : index
    %14 = vector.load %arg5[%c0_6, %c0_7] : memref<16x1xi32, #tpu.memory_space<vmem>>, vector<16x1xi32>
    %15 = vector.broadcast %14 : vector<16x1xi32> to vector<16x256xi32>
    %16 = arith.cmpi eq, %9, %15 : vector<16x256xi32>
    %17 = arith.extui %16 : vector<16x256xi1> to vector<16x256xi32>
    %18 = arith.sitofp %17 : vector<16x256xi32> to vector<16x256xf32>
    %c0_8 = arith.constant 0 : index
    %c0_9 = arith.constant 0 : index
    %19 = vector.load %arg8[%c0_8, %c0_9] : memref<16x1xf32, #tpu.memory_space<vmem>>, vector<16x1xf32>
    %cst_10 = arith.constant dense<0xFF800000> : vector<16xf32>
    %20 = vector.multi_reduction <maximumf>, %13, %cst_10 [1] : vector<16x256xf32> to vector<16xf32>
    %21 = vector.shape_cast %20 : vector<16xf32> to vector<16x1xf32>
    %22 = arith.maximumf %19, %21 : vector<16x1xf32>
    %23 = arith.subf %19, %22 : vector<16x1xf32>
    %24 = math.exp %23 : vector<16x1xf32>
    %25 = vector.broadcast %22 : vector<16x1xf32> to vector<16x256xf32>
    %26 = arith.subf %13, %25 : vector<16x256xf32>
    %27 = math.exp %26 : vector<16x256xf32>
    %c0_11 = arith.constant 0 : index
    %c0_12 = arith.constant 0 : index
    %28 = vector.load %arg9[%c0_11, %c0_12] : memref<16x1xf32, #tpu.memory_space<vmem>>, vector<16x1xf32>
    %29 = arith.mulf %28, %24 : vector<16x1xf32>
    %cst_13 = arith.constant dense<0.000000e+00> : vector<16xf32>
    %30 = vector.multi_reduction <add>, %27, %cst_13 [1] : vector<16x256xf32> to vector<16xf32>
    %31 = vector.shape_cast %30 : vector<16xf32> to vector<16x1xf32>
    %32 = arith.addf %29, %31 : vector<16x1xf32>
    %c0_14 = arith.constant 0 : index
    %c0_15 = arith.constant 0 : index
    %33 = vector.load %arg9[%c0_14, %c0_15] : memref<16x1xf32, #tpu.memory_space<vmem>>, vector<16x1xf32>
    tpu.vector_store %arg9[%c0_14, %c0_15], %32 {strides = array<i32>} : memref<16x1xf32, #tpu.memory_space<vmem>>, vector<16x1xf32>,
    %c0_16 = arith.constant 0 : index
    %c0_17 = arith.constant 0 : index
    %34 = vector.load %arg10[%c0_16, %c0_17] : memref<16x1xf32, #tpu.memory_space<vmem>>, vector<16x1xf32>
    %35 = arith.mulf %34, %24 : vector<16x1xf32>
    %c0_18 = arith.constant 0 : index
    %c0_19 = arith.constant 0 : index
    %36 = vector.load %arg4[%c0_18, %c0_19] : memref<1x256xf32, #tpu.memory_space<vmem>>, vector<1x256xf32>
    %37 = vector.broadcast %36 : vector<1x256xf32> to vector<16x256xf32>
    %38 = arith.mulf %27, %37 : vector<16x256xf32>
    %cst_20 = arith.constant dense<0.000000e+00> : vector<16xf32>
    %39 = vector.multi_reduction <add>, %38, %cst_20 [1] : vector<16x256xf32> to vector<16xf32>
    %40 = vector.shape_cast %39 : vector<16xf32> to vector<16x1xf32>
    %41 = arith.addf %35, %40 : vector<16x1xf32>
    %c0_21 = arith.constant 0 : index
    %c0_22 = arith.constant 0 : index
    %42 = vector.load %arg10[%c0_21, %c0_22] : memref<16x1xf32, #tpu.memory_space<vmem>>, vector<16x1xf32>
    tpu.vector_store %arg10[%c0_21, %c0_22], %41 {strides = array<i32>} : memref<16x1xf32, #tpu.memory_space<vmem>>, vector<16x1xf32>,
    %c0_23 = arith.constant 0 : index
    %c0_24 = arith.constant 0 : index
    %43 = vector.load %arg11[%c0_23, %c0_24] : memref<16x1xf32, #tpu.memory_space<vmem>>, vector<16x1xf32>
    %44 = arith.mulf %18, %13 : vector<16x256xf32>
    %cst_25 = arith.constant dense<0.000000e+00> : vector<16xf32>
    %45 = vector.multi_reduction <add>, %44, %cst_25 [1] : vector<16x256xf32> to vector<16xf32>
    %46 = vector.shape_cast %45 : vector<16xf32> to vector<16x1xf32>
    %47 = arith.addf %43, %46 : vector<16x1xf32>
    %c0_26 = arith.constant 0 : index
    %c0_27 = arith.constant 0 : index
    %48 = vector.load %arg11[%c0_26, %c0_27] : memref<16x1xf32, #tpu.memory_space<vmem>>, vector<16x1xf32>
    tpu.vector_store %arg11[%c0_26, %c0_27], %47 {strides = array<i32>} : memref<16x1xf32, #tpu.memory_space<vmem>>, vector<16x1xf32>,
    %c0_28 = arith.constant 0 : index
    %c0_29 = arith.constant 0 : index
    %49 = vector.load %arg12[%c0_28, %c0_29] : memref<16x128xf32, #tpu.memory_space<vmem>>, vector<16x128xf32>
    %50 = vector.broadcast %24 : vector<16x1xf32> to vector<16x128xf32>
    %51 = arith.mulf %49, %50 : vector<16x128xf32>
    %52 = arith.truncf %27 : vector<16x256xf32> to vector<16x256xbf16>
    %cst_30 = arith.constant dense<0.000000e+00> : vector<16x128xf32>
    %53 = tpu.matmul %52, %4, %cst_30 {dimension_numbers = #tpu.dot_dimension_numbers<[1], [0], [0], [1], [0, 0, 1, 1], [], []>} : vector<16x256xbf16>, vector<256x128xbf16>, vector<16x128xf32> -> vector<16x128xf32>
    %54 = arith.addf %51, %53 : vector<16x128xf32>
    %c0_31 = arith.constant 0 : index
    %c0_32 = arith.constant 0 : index
    %55 = vector.load %arg12[%c0_31, %c0_32] : memref<16x128xf32, #tpu.memory_space<vmem>>, vector<16x128xf32>
    tpu.vector_store %arg12[%c0_31, %c0_32], %54 {strides = array<i32>} : memref<16x128xf32, #tpu.memory_space<vmem>>, vector<16x128xf32>,
    %c0_33 = arith.constant 0 : index
    %c0_34 = arith.constant 0 : index
    %56 = vector.load %arg8[%c0_33, %c0_34] : memref<16x1xf32, #tpu.memory_space<vmem>>, vector<16x1xf32>
    tpu.vector_store %arg8[%c0_33, %c0_34], %22 {strides = array<i32>} : memref<16x1xf32, #tpu.memory_space<vmem>>, vector<16x1xf32>,
    %c0_i32_35 = arith.constant 0 : i32
    %57 = arith.cmpi eq, %arg1, %c0_i32_35 : i32
    %58 = arith.extui %57 : i1 to i32
    %c0_i32_36 = arith.constant 0 : i32
    %59 = arith.cmpi ne, %58, %c0_i32_36 : i32
    scf.if %59 {
      %c0_37 = arith.constant 0 : index
      %c0_38 = arith.constant 0 : index
      %60 = vector.load %arg8[%c0_37, %c0_38] : memref<16x1xf32, #tpu.memory_space<vmem>>, vector<16x1xf32>
      %c0_39 = arith.constant 0 : index
      %c0_40 = arith.constant 0 : index
      %61 = vector.load %arg10[%c0_39, %c0_40] : memref<16x1xf32, #tpu.memory_space<vmem>>, vector<16x1xf32>
      %62 = math.log %61 : vector<16x1xf32>
      %63 = arith.addf %60, %62 : vector<16x1xf32>
      %c0_41 = arith.constant 0 : index
      %c0_42 = arith.constant 0 : index
      %64 = vector.load %arg11[%c0_41, %c0_42] : memref<16x1xf32, #tpu.memory_space<vmem>>, vector<16x1xf32>
      %65 = arith.subf %63, %64 : vector<16x1xf32>
      %c0_43 = arith.constant 0 : index
      %c0_44 = arith.constant 0 : index
      %66 = vector.load %arg6[%c0_43, %c0_44] : memref<16x1xf32, #tpu.memory_space<vmem>>, vector<16x1xf32>
      tpu.vector_store %arg6[%c0_43, %c0_44], %65 {strides = array<i32>} : memref<16x1xf32, #tpu.memory_space<vmem>>, vector<16x1xf32>,
      %c0_45 = arith.constant 0 : index
      %c0_46 = arith.constant 0 : index
      %67 = vector.load %arg9[%c0_45, %c0_46] : memref<16x1xf32, #tpu.memory_space<vmem>>, vector<16x1xf32>
      %68 = tpu.reciprocal %67 {approx = true} : vector<16x1xf32> -> vector<16x1xf32>
      %c0_47 = arith.constant 0 : index
      %c0_48 = arith.constant 0 : index
      %69 = vector.load %arg12[%c0_47, %c0_48] : memref<16x128xf32, #tpu.memory_space<vmem>>, vector<16x128xf32>
      %70 = vector.broadcast %68 : vector<16x1xf32> to vector<16x128xf32>
      %71 = arith.mulf %69, %70 : vector<16x128xf32>
      %72 = arith.truncf %71 : vector<16x128xf32> to vector<16x128xbf16>
      %c0_49 = arith.constant 0 : index
      %c0_50 = arith.constant 0 : index
      %73 = vector.load %arg7[%c0_49, %c0_50] : memref<16x128xbf16, #tpu.memory_space<vmem>>, vector<16x128xbf16>
      tpu.vector_store %arg7[%c0_49, %c0_50], %72 {strides = array<i32>} : memref<16x128xbf16, #tpu.memory_space<vmem>>, vector<16x128xbf16>,
    } else {
    }
    return
  }
  func.func @transform_0(%arg0: i32, %arg1: i32) -> (i32, i32) {
    %c0_i32 = arith.constant 0 : i32
    %c0_i32_0 = arith.constant 0 : i32
    return %arg0, %c0_i32 : i32, i32
  }
  func.func @transform_1(%arg0: i32, %arg1: i32) -> (i32, i32) {
    %c0_i32 = arith.constant 0 : i32
    %c0_i32_0 = arith.constant 0 : i32
    return %arg1, %c0_i32 : i32, i32
  }
  func.func @transform_2(%arg0: i32, %arg1: i32) -> (i32, i32) {
    %c0_i32 = arith.constant 0 : i32
    %c0_i32_0 = arith.constant 0 : i32
    return %c0_i32, %arg1 : i32, i32
  }
  func.func @transform_3(%arg0: i32, %arg1: i32) -> (i32, i32) {
    %c0_i32 = arith.constant 0 : i32
    %c0_i32_0 = arith.constant 0 : i32
    return %arg0, %c0_i32 : i32, i32
  }
  func.func @transform_4(%arg0: i32, %arg1: i32) -> (i32, i32) {
    %c0_i32 = arith.constant 0 : i32
    %c0_i32_0 = arith.constant 0 : i32
    return %arg0, %c0_i32 : i32, i32
  }
  func.func @transform_5(%arg0: i32, %arg1: i32) -> (i32, i32) {
    %c0_i32 = arith.constant 0 : i32
    %c0_i32_0 = arith.constant 0 : i32
    return %arg0, %c0_i32 : i32, i32
  }
}

module attributes {stable_mosaic.version = 11 : i64} {
  func.func @_kl_pos_grad_kernel(%arg0: i32, %arg1: i32, %arg2: memref<16x128xbf16, #tpu.memory_space<vmem>>, %arg3: memref<16x128xbf16, #tpu.memory_space<vmem>>, %arg4: memref<256x128xbf16, #tpu.memory_space<vmem>>, %arg5: memref<1x256xf32, #tpu.memory_space<vmem>>, %arg6: memref<16x1xf32, #tpu.memory_space<vmem>>, %arg7: memref<16x128xbf16, #tpu.memory_space<vmem>>, %arg8: memref<16x1xf32, #tpu.memory_space<vmem>>, %arg9: memref<16x1xf32, #tpu.memory_space<vmem>>, %arg10: memref<16x128xf32, #tpu.memory_space<vmem>>, %arg11: memref<16x1xf32, #tpu.memory_space<vmem>>, %arg12: memref<16x1xf32, #tpu.memory_space<vmem>>, %arg13: memref<16x128xf32, #tpu.memory_space<vmem>>) attributes {dimension_semantics = [#tpu.dimension_semantics<parallel>, #tpu.dimension_semantics<arbitrary>], iteration_bounds = array<i64: 1, 1>, scalar_prefetch = 0 : i64, scratch_operands = 6 : i64, tpu.core_type = #tpu.core_type<tc>, window_params = [{transform_indices = @transform_0, window_bounds = array<i64: 16, 128>}, {transform_indices = @transform_1, window_bounds = array<i64: 16, 128>}, {transform_indices = @transform_2, window_bounds = array<i64: 256, 128>}, {transform_indices = @transform_3, window_bounds = array<i64: 1, 256>}, {transform_indices = @transform_4, window_bounds = array<i64: 16, 1>}, {transform_indices = @transform_5, window_bounds = array<i64: 16, 128>}]} {
    %c0_i32 = arith.constant 0 : i32
    %0 = arith.cmpi eq, %arg1, %c0_i32 : i32
    %1 = arith.extui %0 : i1 to i32
    %c0_i32_0 = arith.constant 0 : i32
    %2 = arith.cmpi ne, %1, %c0_i32_0 : i32
    scf.if %2 {
      %cst_44 = arith.constant -1.000000e+30 : f32
      %70 = vector.broadcast %cst_44 : f32 to vector<16x1xf32>
      %c0_45 = arith.constant 0 : index
      %c0_46 = arith.constant 0 : index
      %71 = vector.load %arg8[%c0_45, %c0_46] : memref<16x1xf32, #tpu.memory_space<vmem>>, vector<16x1xf32>
      tpu.vector_store %arg8[%c0_45, %c0_46], %70 {strides = array<i32>} : memref<16x1xf32, #tpu.memory_space<vmem>>, vector<16x1xf32>,
      %cst_47 = arith.constant -1.000000e+30 : f32
      %72 = vector.broadcast %cst_47 : f32 to vector<16x1xf32>
      %c0_48 = arith.constant 0 : index
      %c0_49 = arith.constant 0 : index
      %73 = vector.load %arg11[%c0_48, %c0_49] : memref<16x1xf32, #tpu.memory_space<vmem>>, vector<16x1xf32>
      tpu.vector_store %arg11[%c0_48, %c0_49], %72 {strides = array<i32>} : memref<16x1xf32, #tpu.memory_space<vmem>>, vector<16x1xf32>,
      %cst_50 = arith.constant 0.000000e+00 : f32
      %74 = vector.broadcast %cst_50 : f32 to vector<16x1xf32>
      %c0_51 = arith.constant 0 : index
      %c0_52 = arith.constant 0 : index
      %75 = vector.load %arg9[%c0_51, %c0_52] : memref<16x1xf32, #tpu.memory_space<vmem>>, vector<16x1xf32>
      tpu.vector_store %arg9[%c0_51, %c0_52], %74 {strides = array<i32>} : memref<16x1xf32, #tpu.memory_space<vmem>>, vector<16x1xf32>,
      %cst_53 = arith.constant 0.000000e+00 : f32
      %76 = vector.broadcast %cst_53 : f32 to vector<16x1xf32>
      %c0_54 = arith.constant 0 : index
      %c0_55 = arith.constant 0 : index
      %77 = vector.load %arg12[%c0_54, %c0_55] : memref<16x1xf32, #tpu.memory_space<vmem>>, vector<16x1xf32>
      tpu.vector_store %arg12[%c0_54, %c0_55], %76 {strides = array<i32>} : memref<16x1xf32, #tpu.memory_space<vmem>>, vector<16x1xf32>,
      %cst_56 = arith.constant 0.000000e+00 : f32
      %78 = vector.broadcast %cst_56 : f32 to vector<16x128xf32>
      %c0_57 = arith.constant 0 : index
      %c0_58 = arith.constant 0 : index
      %79 = vector.load %arg10[%c0_57, %c0_58] : memref<16x128xf32, #tpu.memory_space<vmem>>, vector<16x128xf32>
      tpu.vector_store %arg10[%c0_57, %c0_58], %78 {strides = array<i32>} : memref<16x128xf32, #tpu.memory_space<vmem>>, vector<16x128xf32>,
      %cst_59 = arith.constant 0.000000e+00 : f32
      %80 = vector.broadcast %cst_59 : f32 to vector<16x128xf32>
      %c0_60 = arith.constant 0 : index
      %c0_61 = arith.constant 0 : index
      %81 = vector.load %arg13[%c0_60, %c0_61] : memref<16x128xf32, #tpu.memory_space<vmem>>, vector<16x128xf32>
      tpu.vector_store %arg13[%c0_60, %c0_61], %80 {strides = array<i32>} : memref<16x128xf32, #tpu.memory_space<vmem>>, vector<16x128xf32>,
    } else {
    }
    %c0 = arith.constant 0 : index
    %c0_1 = arith.constant 0 : index
    %3 = vector.load %arg4[%c0, %c0_1] : memref<256x128xbf16, #tpu.memory_space<vmem>>, vector<256x128xbf16>
    %c0_2 = arith.constant 0 : index
    %c0_3 = arith.constant 0 : index
    %4 = vector.load %arg2[%c0_2, %c0_3] : memref<16x128xbf16, #tpu.memory_space<vmem>>, vector<16x128xbf16>
    %cst = arith.constant dense<0.000000e+00> : vector<16x256xf32>
    %5 = tpu.matmul %4, %3, %cst {dimension_numbers = #tpu.dot_dimension_numbers<[1], [1], [0], [0], [0, 0, 1, 0], [], []>} : vector<16x128xbf16>, vector<256x128xbf16>, vector<16x256xf32> -> vector<16x256xf32>
    %c0_4 = arith.constant 0 : index
    %c0_5 = arith.constant 0 : index
    %6 = vector.load %arg3[%c0_4, %c0_5] : memref<16x128xbf16, #tpu.memory_space<vmem>>, vector<16x128xbf16>
    %cst_6 = arith.constant dense<0.000000e+00> : vector<16x256xf32>
    %7 = tpu.matmul %6, %3, %cst_6 {dimension_numbers = #tpu.dot_dimension_numbers<[1], [1], [0], [0], [0, 0, 1, 0], [], []>} : vector<16x128xbf16>, vector<256x128xbf16>, vector<16x256xf32> -> vector<16x256xf32>
    %c0_7 = arith.constant 0 : index
    %c0_8 = arith.constant 0 : index
    %8 = vector.load %arg5[%c0_7, %c0_8] : memref<1x256xf32, #tpu.memory_space<vmem>>, vector<1x256xf32>
    %9 = vector.broadcast %8 : vector<1x256xf32> to vector<16x256xf32>
    %10 = arith.addf %7, %9 : vector<16x256xf32>
    %c256_i32 = arith.constant 256 : i32
    %11 = arith.muli %arg1, %c256_i32 : i32
    %12 = tpu.iota {dimensions = array<i32: 1>} : vector<16x256xi32>
    %13 = vector.broadcast %11 : i32 to vector<16x256xi32>
    %14 = arith.addi %13, %12 : vector<16x256xi32>
    %c256_i32_9 = arith.constant 256 : i32
    %15 = vector.broadcast %c256_i32_9 : i32 to vector<16x256xi32>
    %16 = arith.cmpi slt, %14, %15 : vector<16x256xi32>
    %cst_10 = arith.constant -1.000000e+30 : f32
    %17 = vector.broadcast %cst_10 : f32 to vector<16x256xf32>
    %18 = arith.select %16, %5, %17 : vector<16x256xi1>, vector<16x256xf32>
    %cst_11 = arith.constant -1.000000e+30 : f32
    %19 = vector.broadcast %cst_11 : f32 to vector<16x256xf32>
    %20 = arith.select %16, %10, %19 : vector<16x256xi1>, vector<16x256xf32>
    %c0_12 = arith.constant 0 : index
    %c0_13 = arith.constant 0 : index
    %21 = vector.load %arg8[%c0_12, %c0_13] : memref<16x1xf32, #tpu.memory_space<vmem>>, vector<16x1xf32>
    %cst_14 = arith.constant dense<0xFF800000> : vector<16xf32>
    %22 = vector.multi_reduction <maximumf>, %18, %cst_14 [1] : vector<16x256xf32> to vector<16xf32>
    %23 = vector.shape_cast %22 : vector<16xf32> to vector<16x1xf32>
    %24 = arith.maximumf %21, %23 : vector<16x1xf32>
    %25 = arith.subf %21, %24 : vector<16x1xf32>
    %26 = math.exp %25 : vector<16x1xf32>
    %27 = vector.broadcast %24 : vector<16x1xf32> to vector<16x256xf32>
    %28 = arith.subf %18, %27 : vector<16x256xf32>
    %29 = math.exp %28 : vector<16x256xf32>
    %c0_15 = arith.constant 0 : index
    %c0_16 = arith.constant 0 : index
    %30 = vector.load %arg9[%c0_15, %c0_16] : memref<16x1xf32, #tpu.memory_space<vmem>>, vector<16x1xf32>
    %31 = arith.mulf %30, %26 : vector<16x1xf32>
    %cst_17 = arith.constant dense<0.000000e+00> : vector<16xf32>
    %32 = vector.multi_reduction <add>, %29, %cst_17 [1] : vector<16x256xf32> to vector<16xf32>
    %33 = vector.shape_cast %32 : vector<16xf32> to vector<16x1xf32>
    %34 = arith.addf %31, %33 : vector<16x1xf32>
    %c0_18 = arith.constant 0 : index
    %c0_19 = arith.constant 0 : index
    %35 = vector.load %arg9[%c0_18, %c0_19] : memref<16x1xf32, #tpu.memory_space<vmem>>, vector<16x1xf32>
    tpu.vector_store %arg9[%c0_18, %c0_19], %34 {strides = array<i32>} : memref<16x1xf32, #tpu.memory_space<vmem>>, vector<16x1xf32>,
    %c0_20 = arith.constant 0 : index
    %c0_21 = arith.constant 0 : index
    %36 = vector.load %arg10[%c0_20, %c0_21] : memref<16x128xf32, #tpu.memory_space<vmem>>, vector<16x128xf32>
    %37 = vector.broadcast %26 : vector<16x1xf32> to vector<16x128xf32>
    %38 = arith.mulf %36, %37 : vector<16x128xf32>
    %39 = arith.truncf %29 : vector<16x256xf32> to vector<16x256xbf16>
    %cst_22 = arith.constant dense<0.000000e+00> : vector<16x128xf32>
    %40 = tpu.matmul %39, %3, %cst_22 {dimension_numbers = #tpu.dot_dimension_numbers<[1], [0], [0], [1], [0, 0, 1, 1], [], []>} : vector<16x256xbf16>, vector<256x128xbf16>, vector<16x128xf32> -> vector<16x128xf32>
    %41 = arith.addf %38, %40 : vector<16x128xf32>
    %c0_23 = arith.constant 0 : index
    %c0_24 = arith.constant 0 : index
    %42 = vector.load %arg10[%c0_23, %c0_24] : memref<16x128xf32, #tpu.memory_space<vmem>>, vector<16x128xf32>
    tpu.vector_store %arg10[%c0_23, %c0_24], %41 {strides = array<i32>} : memref<16x128xf32, #tpu.memory_space<vmem>>, vector<16x128xf32>,
    %c0_25 = arith.constant 0 : index
    %c0_26 = arith.constant 0 : index
    %43 = vector.load %arg8[%c0_25, %c0_26] : memref<16x1xf32, #tpu.memory_space<vmem>>, vector<16x1xf32>
    tpu.vector_store %arg8[%c0_25, %c0_26], %24 {strides = array<i32>} : memref<16x1xf32, #tpu.memory_space<vmem>>, vector<16x1xf32>,
    %c0_27 = arith.constant 0 : index
    %c0_28 = arith.constant 0 : index
    %44 = vector.load %arg11[%c0_27, %c0_28] : memref<16x1xf32, #tpu.memory_space<vmem>>, vector<16x1xf32>
    %cst_29 = arith.constant dense<0xFF800000> : vector<16xf32>
    %45 = vector.multi_reduction <maximumf>, %20, %cst_29 [1] : vector<16x256xf32> to vector<16xf32>
    %46 = vector.shape_cast %45 : vector<16xf32> to vector<16x1xf32>
    %47 = arith.maximumf %44, %46 : vector<16x1xf32>
    %48 = arith.subf %44, %47 : vector<16x1xf32>
    %49 = math.exp %48 : vector<16x1xf32>
    %50 = vector.broadcast %47 : vector<16x1xf32> to vector<16x256xf32>
    %51 = arith.subf %20, %50 : vector<16x256xf32>
    %52 = math.exp %51 : vector<16x256xf32>
    %c0_30 = arith.constant 0 : index
    %c0_31 = arith.constant 0 : index
    %53 = vector.load %arg12[%c0_30, %c0_31] : memref<16x1xf32, #tpu.memory_space<vmem>>, vector<16x1xf32>
    %54 = arith.mulf %53, %49 : vector<16x1xf32>
    %cst_32 = arith.constant dense<0.000000e+00> : vector<16xf32>
    %55 = vector.multi_reduction <add>, %52, %cst_32 [1] : vector<16x256xf32> to vector<16xf32>
    %56 = vector.shape_cast %55 : vector<16xf32> to vector<16x1xf32>
    %57 = arith.addf %54, %56 : vector<16x1xf32>
    %c0_33 = arith.constant 0 : index
    %c0_34 = arith.constant 0 : index
    %58 = vector.load %arg12[%c0_33, %c0_34] : memref<16x1xf32, #tpu.memory_space<vmem>>, vector<16x1xf32>
    tpu.vector_store %arg12[%c0_33, %c0_34], %57 {strides = array<i32>} : memref<16x1xf32, #tpu.memory_space<vmem>>, vector<16x1xf32>,
    %c0_35 = arith.constant 0 : index
    %c0_36 = arith.constant 0 : index
    %59 = vector.load %arg13[%c0_35, %c0_36] : memref<16x128xf32, #tpu.memory_space<vmem>>, vector<16x128xf32>
    %60 = vector.broadcast %49 : vector<16x1xf32> to vector<16x128xf32>
    %61 = arith.mulf %59, %60 : vector<16x128xf32>
    %62 = arith.truncf %52 : vector<16x256xf32> to vector<16x256xbf16>
    %cst_37 = arith.constant dense<0.000000e+00> : vector<16x128xf32>
    %63 = tpu.matmul %62, %3, %cst_37 {dimension_numbers = #tpu.dot_dimension_numbers<[1], [0], [0], [1], [0, 0, 1, 1], [], []>} : vector<16x256xbf16>, vector<256x128xbf16>, vector<16x128xf32> -> vector<16x128xf32>
    %64 = arith.addf %61, %63 : vector<16x128xf32>
    %c0_38 = arith.constant 0 : index
    %c0_39 = arith.constant 0 : index
    %65 = vector.load %arg13[%c0_38, %c0_39] : memref<16x128xf32, #tpu.memory_space<vmem>>, vector<16x128xf32>
    tpu.vector_store %arg13[%c0_38, %c0_39], %64 {strides = array<i32>} : memref<16x128xf32, #tpu.memory_space<vmem>>, vector<16x128xf32>,
    %c0_40 = arith.constant 0 : index
    %c0_41 = arith.constant 0 : index
    %66 = vector.load %arg11[%c0_40, %c0_41] : memref<16x1xf32, #tpu.memory_space<vmem>>, vector<16x1xf32>
    tpu.vector_store %arg11[%c0_40, %c0_41], %47 {strides = array<i32>} : memref<16x1xf32, #tpu.memory_space<vmem>>, vector<16x1xf32>,
    %c0_i32_42 = arith.constant 0 : i32
    %67 = arith.cmpi eq, %arg1, %c0_i32_42 : i32
    %68 = arith.extui %67 : i1 to i32
    %c0_i32_43 = arith.constant 0 : i32
    %69 = arith.cmpi ne, %68, %c0_i32_43 : i32
    scf.if %69 {
      %c0_44 = arith.constant 0 : index
      %c0_45 = arith.constant 0 : index
      %70 = vector.load %arg10[%c0_44, %c0_45] : memref<16x128xf32, #tpu.memory_space<vmem>>, vector<16x128xf32>
      %c0_46 = arith.constant 0 : index
      %c0_47 = arith.constant 0 : index
      %71 = vector.load %arg9[%c0_46, %c0_47] : memref<16x1xf32, #tpu.memory_space<vmem>>, vector<16x1xf32>
      %72 = tpu.reciprocal %71 {approx = true} : vector<16x1xf32> -> vector<16x1xf32>
      %73 = vector.broadcast %72 : vector<16x1xf32> to vector<16x128xf32>
      %74 = arith.mulf %70, %73 : vector<16x128xf32>
      %c0_48 = arith.constant 0 : index
      %c0_49 = arith.constant 0 : index
      %75 = vector.load %arg13[%c0_48, %c0_49] : memref<16x128xf32, #tpu.memory_space<vmem>>, vector<16x128xf32>
      %c0_50 = arith.constant 0 : index
      %c0_51 = arith.constant 0 : index
      %76 = vector.load %arg12[%c0_50, %c0_51] : memref<16x1xf32, #tpu.memory_space<vmem>>, vector<16x1xf32>
      %77 = tpu.reciprocal %76 {approx = true} : vector<16x1xf32> -> vector<16x1xf32>
      %78 = vector.broadcast %77 : vector<16x1xf32> to vector<16x128xf32>
      %79 = arith.mulf %75, %78 : vector<16x128xf32>
      %80 = arith.subf %74, %79 : vector<16x128xf32>
      %c0_52 = arith.constant 0 : index
      %c0_53 = arith.constant 0 : index
      %81 = vector.load %arg6[%c0_52, %c0_53] : memref<16x1xf32, #tpu.memory_space<vmem>>, vector<16x1xf32>
      %82 = vector.broadcast %81 : vector<16x1xf32> to vector<16x128xf32>
      %83 = arith.mulf %80, %82 : vector<16x128xf32>
      %84 = arith.truncf %83 : vector<16x128xf32> to vector<16x128xbf16>
      %c0_54 = arith.constant 0 : index
      %c0_55 = arith.constant 0 : index
      %85 = vector.load %arg7[%c0_54, %c0_55] : memref<16x128xbf16, #tpu.memory_space<vmem>>, vector<16x128xbf16>
      tpu.vector_store %arg7[%c0_54, %c0_55], %84 {strides = array<i32>} : memref<16x128xbf16, #tpu.memory_space<vmem>>, vector<16x128xbf16>,
    } else {
    }
    return
  }
  func.func @transform_0(%arg0: i32, %arg1: i32) -> (i32, i32) {
    %c0_i32 = arith.constant 0 : i32
    %c0_i32_0 = arith.constant 0 : i32
    return %arg0, %c0_i32 : i32, i32
  }
  func.func @transform_1(%arg0: i32, %arg1: i32) -> (i32, i32) {
    %c0_i32 = arith.constant 0 : i32
    %c0_i32_0 = arith.constant 0 : i32
    return %arg0, %c0_i32 : i32, i32
  }
  func.func @transform_2(%arg0: i32, %arg1: i32) -> (i32, i32) {
    %c0_i32 = arith.constant 0 : i32
    %c0_i32_0 = arith.constant 0 : i32
    return %arg1, %c0_i32 : i32, i32
  }
  func.func @transform_3(%arg0: i32, %arg1: i32) -> (i32, i32) {
    %c0_i32 = arith.constant 0 : i32
    %c0_i32_0 = arith.constant 0 : i32
    return %c0_i32, %arg1 : i32, i32
  }
  func.func @transform_4(%arg0: i32, %arg1: i32) -> (i32, i32) {
    %c0_i32 = arith.constant 0 : i32
    %c0_i32_0 = arith.constant 0 : i32
    return %arg0, %c0_i32 : i32, i32
  }
  func.func @transform_5(%arg0: i32, %arg1: i32) -> (i32, i32) {
    %c0_i32 = arith.constant 0 : i32
    %c0_i32_0 = arith.constant 0 : i32
    return %arg0, %c0_i32 : i32, i32
  }
}

module attributes {stable_mosaic.version = 11 : i64} {
  func.func @_perturb_kernel(%arg0: i32, %arg1: memref<16x128xf32, #tpu.memory_space<vmem>>, %arg2: memref<16x128xf32, #tpu.memory_space<vmem>>, %arg3: memref<16x128xf32, #tpu.memory_space<vmem>>) attributes {dimension_semantics = [#tpu.dimension_semantics<parallel>], iteration_bounds = array<i64: 1>, scalar_prefetch = 0 : i64, scratch_operands = 0 : i64, tpu.core_type = #tpu.core_type<tc>, window_params = [{transform_indices = @transform_0, window_bounds = array<i64: 16, 128>}, {transform_indices = @transform_1, window_bounds = array<i64: 16, 128>}, {transform_indices = @transform_2, window_bounds = array<i64: 16, 128>}]} {
    %c0 = arith.constant 0 : index
    %c0_0 = arith.constant 0 : index
    %0 = vector.load %arg2[%c0, %c0_0] : memref<16x128xf32, #tpu.memory_space<vmem>>, vector<16x128xf32>
    %1 = arith.mulf %0, %0 : vector<16x128xf32>
    %cst = arith.constant dense<0.000000e+00> : vector<16xf32>
    %2 = vector.multi_reduction <add>, %1, %cst [1] : vector<16x128xf32> to vector<16xf32>
    %3 = vector.shape_cast %2 : vector<16xf32> to vector<16x1xf32>
    %4 = math.sqrt %3 : vector<16x1xf32>
    %cst_1 = arith.constant 9.99999996E-13 : f32
    %5 = vector.broadcast %cst_1 : f32 to vector<16x1xf32>
    %6 = arith.addf %4, %5 : vector<16x1xf32>
    %7 = tpu.reciprocal %6 {approx = true} : vector<16x1xf32> -> vector<16x1xf32>
    %c0_2 = arith.constant 0 : index
    %c0_3 = arith.constant 0 : index
    %8 = vector.load %arg1[%c0_2, %c0_3] : memref<16x128xf32, #tpu.memory_space<vmem>>, vector<16x128xf32>
    %cst_4 = arith.constant 1.000000e+00 : f32
    %9 = vector.broadcast %cst_4 : f32 to vector<16x128xf32>
    %10 = arith.mulf %9, %0 : vector<16x128xf32>
    %11 = vector.broadcast %7 : vector<16x1xf32> to vector<16x128xf32>
    %12 = arith.mulf %10, %11 : vector<16x128xf32>
    %13 = arith.addf %8, %12 : vector<16x128xf32>
    %c0_5 = arith.constant 0 : index
    %c0_6 = arith.constant 0 : index
    %14 = vector.load %arg3[%c0_5, %c0_6] : memref<16x128xf32, #tpu.memory_space<vmem>>, vector<16x128xf32>
    tpu.vector_store %arg3[%c0_5, %c0_6], %13 {strides = array<i32>} : memref<16x128xf32, #tpu.memory_space<vmem>>, vector<16x128xf32>,
    return
  }
  func.func @transform_0(%arg0: i32) -> (i32, i32) {
    %c0_i32 = arith.constant 0 : i32
    %c0_i32_0 = arith.constant 0 : i32
    return %arg0, %c0_i32 : i32, i32
  }
  func.func @transform_1(%arg0: i32) -> (i32, i32) {
    %c0_i32 = arith.constant 0 : i32
    %c0_i32_0 = arith.constant 0 : i32
    return %arg0, %c0_i32 : i32, i32
  }
  func.func @transform_2(%arg0: i32) -> (i32, i32) {
    %c0_i32 = arith.constant 0 : i32
    %c0_i32_0 = arith.constant 0 : i32
    return %arg0, %c0_i32 : i32, i32
  }
}

</mosaic_0001>

<llo_original>
// kernel: robust_bart_forward.9
$region0: #{robust_bart_forward.9}
  #allocation0 [shape = 'u32[]', space=smem, size = 0x4, offset = 0x4, fixed_abs, tag = 'smem constant byte address 0x4 - core index']
  #allocation1 [shape = 'u32[72,128]{1,0:T(1,128)}', space=vmem, size = 0x9000, scoped, tag = 'internal scratch']
  %s0 = inlined_call_operand.vmem [shape: bf16[16,128], index: 0, kind: input, shape index: {}]
  %s1 = inlined_call_operand.vmem [shape: bf16[128,128], index: 1, kind: input, shape index: {}]
  %s2 = inlined_call_operand.vmem [shape: f32[1,128], index: 2, kind: input, shape index: {}]
  %s3 = inlined_call_operand.vmem [shape: f32[16,128], index: 3, kind: output, shape index: {}]
  %s4 = sld [smem:[#allocation0]]
  $region30: #{robust_bart_forward.9} parent=0
    _
  %s6 = ssub.s32 1, %s4
  %s7 = scalar_select 0, %s6, %s4
  // Predicated region
  $region2: #{robust_bart_forward.9} parent=0 // pred_check
    _
  $region3: #{robust_bart_forward.9} parent=0 // pred_check_branch
    %9 = sbr.rel (0) target = $region5
  $region4: #{robust_bart_forward.9} parent=0 // pred_region
    _
  $region5: #{robust_bart_forward.9} parent=0 // pred_fallthru
    _
  // Predicated region
  $region6: #{robust_bart_forward.9} parent=0 // pred_check
    _
  $region7: #{robust_bart_forward.9} parent=0 // pred_check_branch
    %11 = sbr.rel (0) target = $region9
  $region8: #{robust_bart_forward.9} parent=0 // pred_region
    _
  $region9: #{robust_bart_forward.9} parent=0 // pred_fallthru
    _
  // Predicated region
  $region10: #{robust_bart_forward.9} parent=0 // pred_check
    _
  $region11: #{robust_bart_forward.9} parent=0 // pred_check_branch
    %13 = sbr.rel (0) target = $region13
  $region12: #{robust_bart_forward.9} parent=0 // pred_region
    _
  $region13: #{robust_bart_forward.9} parent=0 // pred_fallthru
    _
  %p14 = scmp.eq.s32.totalorder 0, 0
  // Predicated region
  $region14: #{robust_bart_forward.9} parent=0 // pred_check
    %p15 = pneg %p14
  $region15: #{robust_bart_forward.9} parent=0 // pred_check_branch
    %17 = sbr.rel (%p15) target = $region17
  $region16: #{robust_bart_forward.9} parent=0 // pred_region
    %18 = vst [vmem:[%s3] sm:$0xff] 0.0
    %19 = vst [vmem:[%s3 + $0x8] sm:$0xff] 0.0
  $region17: #{robust_bart_forward.9} parent=0 // pred_fallthru
    _
  %v20 = vld [vmem:[%s3] sm:$0xff]
  %v21 = vld [vmem:[%s3 + $0x8] sm:$0xff]
  %v22 = vld [vmem:[%s0] sm:$0xf]
  %v23 = vld [vmem:[%s0 + $0x4] sm:$0xf]
  %v24 = vld [vmem:[%s1] sm:$0xf]
  %v25 = vld [vmem:[%s1 + $0x4] sm:$0xf]
  %v26 = vld [vmem:[%s1 + $0x8] sm:$0xf]
  %v27 = vld [vmem:[%s1 + $0xc] sm:$0xf]
  %v28 = vld [vmem:[%s1 + $0x10] sm:$0xf]
  %v29 = vld [vmem:[%s1 + $0x14] sm:$0xf]
  %v30 = vld [vmem:[%s1 + $0x18] sm:$0xf]
  %v31 = vld [vmem:[%s1 + $0x1c] sm:$0xf]
  %v32 = vld [vmem:[%s1 + $0x20] sm:$0xf]
  %v33 = vld [vmem:[%s1 + $0x24] sm:$0xf]
  %v34 = vld [vmem:[%s1 + $0x28] sm:$0xf]
  %v35 = vld [vmem:[%s1 + $0x2c] sm:$0xf]
  %v36 = vld [vmem:[%s1 + $0x30] sm:$0xf]
  %v37 = vld [vmem:[%s1 + $0x34] sm:$0xf]
  %v38 = vld [vmem:[%s1 + $0x38] sm:$0xf]
  %v39 = vld [vmem:[%s1 + $0x3c] sm:$0xf]
  %v42 = vunpack.c.l.b16 %v22
  %v43 = vunpack.c.l.b16 %v23
  %v44 = vpack.c.b16 %v43, %v42
  %v62 = vunpack.c.l.b16 %v24
  %v63 = vunpack.c.l.b16 %v25
  %v64 = vunpack.c.l.b16 %v26
  %v65 = vunpack.c.l.b16 %v27
  %v66 = vunpack.c.l.b16 %v28
  %v67 = vunpack.c.l.b16 %v29
  %v68 = vunpack.c.l.b16 %v30
  %v69 = vunpack.c.l.b16 %v31
  %v70 = vunpack.c.l.b16 %v32
  %v71 = vunpack.c.l.b16 %v33
  %v72 = vunpack.c.l.b16 %v34
  %v73 = vunpack.c.l.b16 %v35
  %v74 = vunpack.c.l.b16 %v36
  %v75 = vunpack.c.l.b16 %v37
  %v76 = vunpack.c.l.b16 %v38
  %v77 = vunpack.c.l.b16 %v39
  %v78 = vpack.c.b16 %v63, %v62
  %v79 = vpack.c.b16 %v65, %v64
  %v80 = vpack.c.b16 %v67, %v66
  %v81 = vpack.c.b16 %v69, %v68
  %v82 = vpack.c.b16 %v71, %v70
  %v83 = vpack.c.b16 %v73, %v72
  %v84 = vpack.c.b16 %v75, %v74
  %v85 = vpack.c.b16 %v77, %v76
  %94 = vmatpush.bf16.msra.mxu0 %v85
  %95 = vmatpush.bf16.msra.mxu0 %v84
  %96 = vmatpush.bf16.msra.mxu0 %v83
  %97 = vmatpush.bf16.msra.mxu0 %v82
  %98 = vmatpush.bf16.msra.mxu0 %v81
  %99 = vmatpush.bf16.msra.mxu0 %v80
  %100 = vmatpush.bf16.msra.mxu0 %v79
  %101 = vmatpush.bf16.msra.mxu0 %v78
  %102 = vmatmul.bf16.gmra.mxu0 %v44
  %v103 = vpop.f32.mrf.mxu0
  %v104 = vadd.f32 0.0, %v103
  %v105 = vpop.f32.mrf.mxu0
  %v106 = vadd.f32 0.0, %v105
  %107 = vdwg.mxu0
  %v108 = vadd.f32 %v20, %v104
  %v109 = vadd.f32 %v21, %v106
  %110 = vst [vmem:[%s3] sm:$0xff] %v108
  %111 = vst [vmem:[%s3 + $0x8] sm:$0xff] %v109
  // Predicated region
  $region18: #{robust_bart_forward.9} parent=0 // pred_check
    %p112 = pneg %p14
  $region19: #{robust_bart_forward.9} parent=0 // pred_check_branch
    %114 = sbr.rel (%p112) target = $region21
  $region20: #{robust_bart_forward.9} parent=0 // pred_region
    %v115 = vld [vmem:[%s3] sm:$0xff]
    %v116 = vld [vmem:[%s3 + $0x8] sm:$0xff]
    %v117 = vld [vmem:[%s2] sm:$0x1]
    %v119 = vperm.slane %v117, 0
    %v121 = vadd.f32 %v115, %v119
    %v122 = vadd.f32 %v116, %v119
    %123 = vst [vmem:[%s3] sm:$0xff] %v121
    %124 = vst [vmem:[%s3 + $0x8] sm:$0xff] %v122
  $region21: #{robust_bart_forward.9} parent=0 // pred_fallthru
    _
  // Predicated region
  $region22: #{robust_bart_forward.9} parent=0 // pred_check
    _
  $region23: #{robust_bart_forward.9} parent=0 // pred_check_branch
    %126 = sbr.rel (0) target = $region25
  $region24: #{robust_bart_forward.9} parent=0 // pred_region
    _
  $region25: #{robust_bart_forward.9} parent=0 // pred_fallthru
    _
  // Predicated region
  $region26: #{robust_bart_forward.9} parent=0 // pred_check
    _
  $region27: #{robust_bart_forward.9} parent=0 // pred_check_branch
    %128 = sbr.rel (0) target = $region29
  $region28: #{robust_bart_forward.9} parent=0 // pred_region
    _
  $region29: #{robust_bart_forward.9} parent=0 // pred_fallthru
    _

// kernel: robust_bart_forward.8
$region0: #{robust_bart_forward.8}
  #allocation0 [shape = 'u32[]', space=smem, size = 0x4, offset = 0x4, fixed_abs, tag = 'smem constant byte address 0x4 - core index']
  #allocation1 [shape = 'u32[72,128]{1,0:T(1,128)}', space=vmem, size = 0x9000, scoped, tag = 'internal scratch']
  %s0 = inlined_call_operand.vmem [shape: bf16[32,128], index: 0, kind: input, shape index: {}]
  %s1 = inlined_call_operand.vmem [shape: bf16[128,128], index: 1, kind: input, shape index: {}]
  %s2 = inlined_call_operand.vmem [shape: f32[1,128], index: 2, kind: input, shape index: {}]
  %s3 = inlined_call_operand.vmem [shape: f32[32,128], index: 3, kind: output, shape index: {}]
  %s4 = sld [smem:[#allocation0]]
  $region30: #{robust_bart_forward.8} parent=0
    _
  %s6 = ssub.s32 1, %s4
  %s7 = scalar_select 0, %s6, %s4
  // Predicated region
  $region2: #{robust_bart_forward.8} parent=0 // pred_check
    _
  $region3: #{robust_bart_forward.8} parent=0 // pred_check_branch
    %9 = sbr.rel (0) target = $region5
  $region4: #{robust_bart_forward.8} parent=0 // pred_region
    _
  $region5: #{robust_bart_forward.8} parent=0 // pred_fallthru
    _
  // Predicated region
  $region6: #{robust_bart_forward.8} parent=0 // pred_check
    _
  $region7: #{robust_bart_forward.8} parent=0 // pred_check_branch
    %11 = sbr.rel (0) target = $region9
  $region8: #{robust_bart_forward.8} parent=0 // pred_region
    _
  $region9: #{robust_bart_forward.8} parent=0 // pred_fallthru
    _
  // Predicated region
  $region10: #{robust_bart_forward.8} parent=0 // pred_check
    _
  $region11: #{robust_bart_forward.8} parent=0 // pred_check_branch
    %13 = sbr.rel (0) target = $region13
  $region12: #{robust_bart_forward.8} parent=0 // pred_region
    _
  $region13: #{robust_bart_forward.8} parent=0 // pred_fallthru
    _
  %p14 = scmp.eq.s32.totalorder 0, 0
  // Predicated region
  $region14: #{robust_bart_forward.8} parent=0 // pred_check
    %p15 = pneg %p14
  $region15: #{robust_bart_forward.8} parent=0 // pred_check_branch
    %17 = sbr.rel (%p15) target = $region17
  $region16: #{robust_bart_forward.8} parent=0 // pred_region
    %18 = vst [vmem:[%s3] sm:$0xff] 0.0
    %19 = vst [vmem:[%s3 + $0x8] sm:$0xff] 0.0
    %20 = vst [vmem:[%s3 + $0x10] sm:$0xff] 0.0
    %21 = vst [vmem:[%s3 + $0x18] sm:$0xff] 0.0
  $region17: #{robust_bart_forward.8} parent=0 // pred_fallthru
    _
  %v22 = vld [vmem:[%s3] sm:$0xff]
  %v23 = vld [vmem:[%s3 + $0x8] sm:$0xff]
  %v24 = vld [vmem:[%s3 + $0x10] sm:$0xff]
  %v25 = vld [vmem:[%s3 + $0x18] sm:$0xff]
  %v26 = vld [vmem:[%s0] sm:$0xf]
  %v27 = vld [vmem:[%s0 + $0x4] sm:$0xf]
  %v28 = vld [vmem:[%s0 + $0x8] sm:$0xf]
  %v29 = vld [vmem:[%s0 + $0xc] sm:$0xf]
  %v30 = vld [vmem:[%s1] sm:$0xf]
  %v31 = vld [vmem:[%s1 + $0x4] sm:$0xf]
  %v32 = vld [vmem:[%s1 + $0x8] sm:$0xf]
  %v33 = vld [vmem:[%s1 + $0xc] sm:$0xf]
  %v34 = vld [vmem:[%s1 + $0x10] sm:$0xf]
  %v35 = vld [vmem:[%s1 + $0x14] sm:$0xf]
  %v36 = vld [vmem:[%s1 + $0x18] sm:$0xf]
  %v37 = vld [vmem:[%s1 + $0x1c] sm:$0xf]
  %v38 = vld [vmem:[%s1 + $0x20] sm:$0xf]
  %v39 = vld [vmem:[%s1 + $0x24] sm:$0xf]
  %v40 = vld [vmem:[%s1 + $0x28] sm:$0xf]
  %v41 = vld [vmem:[%s1 + $0x2c] sm:$0xf]
  %v42 = vld [vmem:[%s1 + $0x30] sm:$0xf]
  %v43 = vld [vmem:[%s1 + $0x34] sm:$0xf]
  %v44 = vld [vmem:[%s1 + $0x38] sm:$0xf]
  %v45 = vld [vmem:[%s1 + $0x3c] sm:$0xf]
  %v50 = vunpack.c.l.b16 %v26
  %v51 = vunpack.c.l.b16 %v27
  %v52 = vunpack.c.l.b16 %v28
  %v53 = vunpack.c.l.b16 %v29
  %v54 = vpack.c.b16 %v51, %v50
  %v55 = vpack.c.b16 %v53, %v52
  %v74 = vunpack.c.l.b16 %v30
  %v75 = vunpack.c.l.b16 %v31
  %v76 = vunpack.c.l.b16 %v32
  %v77 = vunpack.c.l.b16 %v33
  %v78 = vunpack.c.l.b16 %v34
  %v79 = vunpack.c.l.b16 %v35
  %v80 = vunpack.c.l.b16 %v36
  %v81 = vunpack.c.l.b16 %v37
  %v82 = vunpack.c.l.b16 %v38
  %v83 = vunpack.c.l.b16 %v39
  %v84 = vunpack.c.l.b16 %v40
  %v85 = vunpack.c.l.b16 %v41
  %v86 = vunpack.c.l.b16 %v42
  %v87 = vunpack.c.l.b16 %v43
  %v88 = vunpack.c.l.b16 %v44
  %v89 = vunpack.c.l.b16 %v45
  %v90 = vpack.c.b16 %v75, %v74
  %v91 = vpack.c.b16 %v77, %v76
  %v92 = vpack.c.b16 %v79, %v78
  %v93 = vpack.c.b16 %v81, %v80
  %v94 = vpack.c.b16 %v83, %v82
  %v95 = vpack.c.b16 %v85, %v84
  %v96 = vpack.c.b16 %v87, %v86
  %v97 = vpack.c.b16 %v89, %v88
  %106 = vmatpush.bf16.msra.mxu0 %v97
  %107 = vmatpush.bf16.msra.mxu0 %v96
  %108 = vmatpush.bf16.msra.mxu0 %v95
  %109 = vmatpush.bf16.msra.mxu0 %v94
  %110 = vmatpush.bf16.msra.mxu0 %v93
  %111 = vmatpush.bf16.msra.mxu0 %v92
  %112 = vmatpush.bf16.msra.mxu0 %v91
  %113 = vmatpush.bf16.msra.mxu0 %v90
  %114 = vmatmul.bf16.gmra.mxu0 %v54
  %v115 = vpop.f32.mrf.mxu0
  %v116 = vadd.f32 0.0, %v115
  %v117 = vpop.f32.mrf.mxu0
  %v118 = vadd.f32 0.0, %v117
  %119 = vmatmul.bf16.gmra.mxu0 %v55
  %v120 = vpop.f32.mrf.mxu0
  %v121 = vadd.f32 0.0, %v120
  %v122 = vpop.f32.mrf.mxu0
  %v123 = vadd.f32 0.0, %v122
  %124 = vdwg.mxu0
  %v125 = vadd.f32 %v22, %v116
  %v126 = vadd.f32 %v23, %v118
  %v127 = vadd.f32 %v24, %v121
  %v128 = vadd.f32 %v25, %v123
  %129 = vst [vmem:[%s3] sm:$0xff] %v125
  %130 = vst [vmem:[%s3 + $0x8] sm:$0xff] %v126
  %131 = vst [vmem:[%s3 + $0x10] sm:$0xff] %v127
  %132 = vst [vmem:[%s3 + $0x18] sm:$0xff] %v128
  // Predicated region
  $region18: #{robust_bart_forward.8} parent=0 // pred_check
    %p133 = pneg %p14
  $region19: #{robust_bart_forward.8} parent=0 // pred_check_branch
    %135 = sbr.rel (%p133) target = $region21
  $region20: #{robust_bart_forward.8} parent=0 // pred_region
    %v136 = vld [vmem:[%s3] sm:$0xff]
    %v137 = vld [vmem:[%s3 + $0x8] sm:$0xff]
    %v138 = vld [vmem:[%s3 + $0x10] sm:$0xff]
    %v139 = vld [vmem:[%s3 + $0x18] sm:$0xff]
    %v140 = vld [vmem:[%s2] sm:$0x1]
    %v142 = vperm.slane %v140, 0
    %v144 = vadd.f32 %v136, %v142
    %v145 = vadd.f32 %v137, %v142
    %v146 = vadd.f32 %v138, %v142
    %v147 = vadd.f32 %v139, %v142
    %v148 = vtanh.pop %v144
    %v149 = vtanh.pop %v145
    %v150 = vtanh.pop %v146
    %v151 = vtanh.pop %v147
    %152 = vst [vmem:[%s3] sm:$0xff] %v148
    %153 = vst [vmem:[%s3 + $0x8] sm:$0xff] %v149
    %154 = vst [vmem:[%s3 + $0x10] sm:$0xff] %v150
    %155 = vst [vmem:[%s3 + $0x18] sm:$0xff] %v151
  $region21: #{robust_bart_forward.8} parent=0 // pred_fallthru
    _
  // Predicated region
  $region22: #{robust_bart_forward.8} parent=0 // pred_check
    _
  $region23: #{robust_bart_forward.8} parent=0 // pred_check_branch
    %157 = sbr.rel (0) target = $region25
  $region24: #{robust_bart_forward.8} parent=0 // pred_region
    _
  $region25: #{robust_bart_forward.8} parent=0 // pred_fallthru
    _
  // Predicated region
  $region26: #{robust_bart_forward.8} parent=0 // pred_check
    _
  $region27: #{robust_bart_forward.8} parent=0 // pred_check_branch
    %159 = sbr.rel (0) target = $region29
  $region28: #{robust_bart_forward.8} parent=0 // pred_region
    _
  $region29: #{robust_bart_forward.8} parent=0 // pred_fallthru
    _

// kernel: robust_bart_forward.13
$region0: #{robust_bart_forward.13}
  #allocation0 [shape = 'u32[]', space=smem, size = 0x4, offset = 0x4, fixed_abs, tag = 'smem constant byte address 0x4 - core index']
  #allocation1 [shape = 'u32[72,128]{1,0:T(1,128)}', space=vmem, size = 0x9000, scoped, tag = 'internal scratch']
  %s0 = inlined_call_operand.vmem [shape: f32[16,128], index: 0, kind: input, shape index: {}]
  %s1 = inlined_call_operand.vmem [shape: f32[16,128], index: 1, kind: input, shape index: {}]
  %s2 = inlined_call_operand.vmem [shape: f32[16,128], index: 2, kind: output, shape index: {}]
  %s3 = sld [smem:[#allocation0]]
  $region18: #{robust_bart_forward.13} parent=0
    _
  %s5 = ssub.s32 1, %s3
  %s6 = scalar_select 0, %s5, %s3
  // Predicated region
  $region2: #{robust_bart_forward.13} parent=0 // pred_check
    _
  $region3: #{robust_bart_forward.13} parent=0 // pred_check_branch
    %8 = sbr.rel (0) target = $region5
  $region4: #{robust_bart_forward.13} parent=0 // pred_region
    _
  $region5: #{robust_bart_forward.13} parent=0 // pred_fallthru
    _
  // Predicated region
  $region6: #{robust_bart_forward.13} parent=0 // pred_check
    _
  $region7: #{robust_bart_forward.13} parent=0 // pred_check_branch
    %10 = sbr.rel (0) target = $region9
  $region8: #{robust_bart_forward.13} parent=0 // pred_region
    _
  $region9: #{robust_bart_forward.13} parent=0 // pred_fallthru
    _
  %v11 = vld [vmem:[%s1] sm:$0xff]
  %v12 = vld [vmem:[%s1 + $0x8] sm:$0xff]
  %v13 = vmul.f32 %v11, %v11
  %v14 = vmul.f32 %v12, %v12
  %15 = vadd.xlane.f32.xlu0 %v13
  %v16 = vpop.xlane.xlu0 %15
  %17 = vadd.xlane.f32.xlu0 %v14
  %v18 = vpop.xlane.xlu0 %17
  %v19 = vrsqrt.pop %v16
  %v20 = vmul.f32 %v19, %v16
  %v21 = vmul.f32 %v20, %v19
  %v22 = vmul.f32 0.5, %v21
  %v23 = vsub.f32 1.5, %v22
  %v24 = vmul.f32 %v19, %v23
  %v25 = vmul.f32 %v16, %v24
  %vm26 = vcmp.eq.f32.partialorder %v16, inf
  %v27 = vsel %vm26, %v16, %v25
  %vm28 = vcmp.eq.f32.partialorder %v16, 0.0
  %v29 = vand.u32 %v16, 2147483648
  %v30 = vsel %vm28, %v29, %v27
  %v31 = vrsqrt.pop %v18
  %v32 = vmul.f32 %v31, %v18
  %v33 = vmul.f32 %v32, %v31
  %v34 = vmul.f32 0.5, %v33
  %v35 = vsub.f32 1.5, %v34
  %v36 = vmul.f32 %v31, %v35
  %v37 = vmul.f32 %v18, %v36
  %vm38 = vcmp.eq.f32.partialorder %v18, inf
  %v39 = vsel %vm38, %v18, %v37
  %vm40 = vcmp.eq.f32.partialorder %v18, 0.0
  %v41 = vand.u32 %v18, 2147483648
  %v42 = vsel %vm40, %v41, %v39
  %v43 = vadd.f32 %v30, 1e-12
  %v44 = vadd.f32 %v42, 1e-12
  %v45 = vrcp.pop %v43
  %v46 = vrcp.pop %v44
  %v47 = vld [vmem:[%s0] sm:$0xff]
  %v48 = vld [vmem:[%s0 + $0x8] sm:$0xff]
  %v49 = vmul.f32 %v11, 3.0
  %v50 = vmul.f32 %v12, 3.0
  %v51 = vmul.f32 %v49, %v45
  %v52 = vmul.f32 %v50, %v46
  %v53 = vadd.f32 %v47, %v51
  %v54 = vadd.f32 %v48, %v52
  %55 = vst [vmem:[%s2] sm:$0xff] %v53
  %56 = vst [vmem:[%s2 + $0x8] sm:$0xff] %v54
  // Predicated region
  $region10: #{robust_bart_forward.13} parent=0 // pred_check
    _
  $region11: #{robust_bart_forward.13} parent=0 // pred_check_branch
    %58 = sbr.rel (0) target = $region13
  $region12: #{robust_bart_forward.13} parent=0 // pred_region
    _
  $region13: #{robust_bart_forward.13} parent=0 // pred_fallthru
    _
  // Predicated region
  $region14: #{robust_bart_forward.13} parent=0 // pred_check
    _
  $region15: #{robust_bart_forward.13} parent=0 // pred_check_branch
    %60 = sbr.rel (0) target = $region17
  $region16: #{robust_bart_forward.13} parent=0 // pred_region
    _
  $region17: #{robust_bart_forward.13} parent=0 // pred_fallthru
    _

// kernel: robust_bart_forward.15
$region0: #{robust_bart_forward.15}
  #allocation0 [shape = 'u32[]', space=smem, size = 0x4, offset = 0x4, fixed_abs, tag = 'smem constant byte address 0x4 - core index']
  #allocation1 [shape = 'u32[72,128]{1,0:T(1,128)}', space=vmem, size = 0x9000, scoped, tag = 'internal scratch']
  %s0 = inlined_call_operand.vmem [shape: f32[16,128], index: 0, kind: input, shape index: {}]
  %s1 = inlined_call_operand.vmem [shape: bf16[16,128], index: 1, kind: input, shape index: {}]
  %s2 = inlined_call_operand.vmem [shape: f32[16,128], index: 2, kind: output, shape index: {}]
  %s3 = sld [smem:[#allocation0]]
  $region18: #{robust_bart_forward.15} parent=0
    _
  %s5 = ssub.s32 1, %s3
  %s6 = scalar_select 0, %s5, %s3
  // Predicated region
  $region2: #{robust_bart_forward.15} parent=0 // pred_check
    _
  $region3: #{robust_bart_forward.15} parent=0 // pred_check_branch
    %8 = sbr.rel (0) target = $region5
  $region4: #{robust_bart_forward.15} parent=0 // pred_region
    _
  $region5: #{robust_bart_forward.15} parent=0 // pred_fallthru
    _
  // Predicated region
  $region6: #{robust_bart_forward.15} parent=0 // pred_check
    _
  $region7: #{robust_bart_forward.15} parent=0 // pred_check_branch
    %10 = sbr.rel (0) target = $region9
  $region8: #{robust_bart_forward.15} parent=0 // pred_region
    _
  $region9: #{robust_bart_forward.15} parent=0 // pred_fallthru
    _
  %v11 = vld [vmem:[%s1] sm:$0xf]
  %v12 = vld [vmem:[%s1 + $0x4] sm:$0xf]
  %v13 = vunpack.c.l.bf16 %v11
  %v14 = vunpack.c.l.bf16 %v12
  %v15 = vmul.f32 %v13, %v13
  %v16 = vmul.f32 %v14, %v14
  %17 = vadd.xlane.f32.xlu0 %v15
  %v18 = vpop.xlane.xlu0 %17
  %19 = vadd.xlane.f32.xlu0 %v16
  %v20 = vpop.xlane.xlu0 %19
  %v21 = vrsqrt.pop %v18
  %v22 = vmul.f32 %v21, %v18
  %v23 = vmul.f32 %v22, %v21
  %v24 = vmul.f32 0.5, %v23
  %v25 = vsub.f32 1.5, %v24
  %v26 = vmul.f32 %v21, %v25
  %v27 = vmul.f32 %v18, %v26
  %vm28 = vcmp.eq.f32.partialorder %v18, inf
  %v29 = vsel %vm28, %v18, %v27
  %vm30 = vcmp.eq.f32.partialorder %v18, 0.0
  %v31 = vand.u32 %v18, 2147483648
  %v32 = vsel %vm30, %v31, %v29
  %v33 = vrsqrt.pop %v20
  %v34 = vmul.f32 %v33, %v20
  %v35 = vmul.f32 %v34, %v33
  %v36 = vmul.f32 0.5, %v35
  %v37 = vsub.f32 1.5, %v36
  %v38 = vmul.f32 %v33, %v37
  %v39 = vmul.f32 %v20, %v38
  %vm40 = vcmp.eq.f32.partialorder %v20, inf
  %v41 = vsel %vm40, %v20, %v39
  %vm42 = vcmp.eq.f32.partialorder %v20, 0.0
  %v43 = vand.u32 %v20, 2147483648
  %v44 = vsel %vm42, %v43, %v41
  %v45 = vadd.f32 %v32, 1e-12
  %v46 = vadd.f32 %v44, 1e-12
  %v47 = vrcp.pop %v45
  %v48 = vrcp.pop %v46
  %v49 = vld [vmem:[%s0] sm:$0xff]
  %v50 = vld [vmem:[%s0 + $0x8] sm:$0xff]
  %v51 = vmul.f32 %v13, -3.0
  %v52 = vmul.f32 %v14, -3.0
  %v53 = vmul.f32 %v51, %v47
  %v54 = vmul.f32 %v52, %v48
  %v55 = vadd.f32 %v49, %v53
  %v56 = vadd.f32 %v50, %v54
  %57 = vst [vmem:[%s2] sm:$0xff] %v55
  %58 = vst [vmem:[%s2 + $0x8] sm:$0xff] %v56
  // Predicated region
  $region10: #{robust_bart_forward.15} parent=0 // pred_check
    _
  $region11: #{robust_bart_forward.15} parent=0 // pred_check_branch
    %60 = sbr.rel (0) target = $region13
  $region12: #{robust_bart_forward.15} parent=0 // pred_region
    _
  $region13: #{robust_bart_forward.15} parent=0 // pred_fallthru
    _
  // Predicated region
  $region14: #{robust_bart_forward.15} parent=0 // pred_check
    _
  $region15: #{robust_bart_forward.15} parent=0 // pred_check_branch
    %62 = sbr.rel (0) target = $region17
  $region16: #{robust_bart_forward.15} parent=0 // pred_region
    _
  $region17: #{robust_bart_forward.15} parent=0 // pred_fallthru
    _

// kernel: robust_bart_forward.11
$region0: #{robust_bart_forward.11}
  #allocation0 [shape = 'u32[]', space=smem, size = 0x4, offset = 0x4, fixed_abs, tag = 'smem constant byte address 0x4 - core index']
  #allocation1 [shape = 'u32[72,128]{1,0:T(1,128)}', space=vmem, size = 0x9000, scoped, tag = 'internal scratch']
  #allocation2 [shape = 'f32[16,1]{1,0:T(8,128)}', space=vmem, size = 0x2000, scoped, tag = 'scratch operand']
  #allocation3 [shape = 'f32[16,1]{1,0:T(8,128)}', space=vmem, size = 0x2000, scoped, tag = 'scratch operand']
  #allocation4 [shape = 'f32[16,1]{1,0:T(8,128)}', space=vmem, size = 0x2000, scoped, tag = 'scratch operand']
  #allocation5 [shape = 'f32[16,1]{1,0:T(8,128)}', space=vmem, size = 0x2000, scoped, tag = 'scratch operand']
  #allocation6 [shape = 'f32[16,128]{1,0:T(8,128)}', space=vmem, size = 0x2000, scoped, tag = 'scratch operand']
  %s0 = inlined_call_operand.vmem [shape: bf16[16,128], index: 0, kind: input, shape index: {}]
  %s1 = inlined_call_operand.vmem [shape: bf16[256,128], index: 1, kind: input, shape index: {}]
  %s2 = inlined_call_operand.vmem [shape: f32[1,256], index: 2, kind: input, shape index: {}]
  %s3 = inlined_call_operand.vmem [shape: s32[16,1], index: 3, kind: input, shape index: {}]
  %s4 = inlined_call_operand.vmem [shape: f32[16,1], index: 4, kind: output, shape index: {0}]
  %s5 = inlined_call_operand.vmem [shape: bf16[16,128], index: 5, kind: output, shape index: {1}]
  %6 = xla_tuple %s4, %s5
  %s7 = sld [smem:[#allocation0]]
  $region42: #{robust_bart_forward.11} parent=0
    _
  %s9 = ssub.s32 1, %s7
  %s10 = scalar_select 0, %s9, %s7
  // Predicated region
  $region2: #{robust_bart_forward.11} parent=0 // pred_check
    _
  $region3: #{robust_bart_forward.11} parent=0 // pred_check_branch
    %12 = sbr.rel (0) target = $region5
  $region4: #{robust_bart_forward.11} parent=0 // pred_region
    _
  $region5: #{robust_bart_forward.11} parent=0 // pred_fallthru
    _
  // Predicated region
  $region6: #{robust_bart_forward.11} parent=0 // pred_check
    _
  $region7: #{robust_bart_forward.11} parent=0 // pred_check_branch
    %14 = sbr.rel (0) target = $region9
  $region8: #{robust_bart_forward.11} parent=0 // pred_region
    _
  $region9: #{robust_bart_forward.11} parent=0 // pred_fallthru
    _
  // Predicated region
  $region10: #{robust_bart_forward.11} parent=0 // pred_check
    _
  $region11: #{robust_bart_forward.11} parent=0 // pred_check_branch
    %16 = sbr.rel (0) target = $region13
  $region12: #{robust_bart_forward.11} parent=0 // pred_region
    _
  $region13: #{robust_bart_forward.11} parent=0 // pred_fallthru
    _
  // Predicated region
  $region14: #{robust_bart_forward.11} parent=0 // pred_check
    _
  $region15: #{robust_bart_forward.11} parent=0 // pred_check_branch
    %18 = sbr.rel (0) target = $region17
  $region16: #{robust_bart_forward.11} parent=0 // pred_region
    _
  $region17: #{robust_bart_forward.11} parent=0 // pred_fallthru
    _
  %p19 = scmp.eq.s32.totalorder 0, 0
  // Predicated region
  $region18: #{robust_bart_forward.11} parent=0 // pred_check
    %p20 = pneg %p19
  $region19: #{robust_bart_forward.11} parent=0 // pred_check_branch
    %22 = sbr.rel (%p20) target = $region21
  $region20: #{robust_bart_forward.11} parent=0 // pred_region
    %vm23 = vcmask 7168
    %24 = vst.msk [vmem:[#allocation2] sm:$0xff] %vm23, -1e+30
    %25 = vst.msk [vmem:[#allocation2 + $0x8] sm:$0xff] %vm23, -1e+30
    %26 = vst.msk [vmem:[#allocation3] sm:$0xff] %vm23, 0.0
    %27 = vst.msk [vmem:[#allocation3 + $0x8] sm:$0xff] %vm23, 0.0
    %28 = vst.msk [vmem:[#allocation4] sm:$0xff] %vm23, 0.0
    %29 = vst.msk [vmem:[#allocation4 + $0x8] sm:$0xff] %vm23, 0.0
    %30 = vst.msk [vmem:[#allocation5] sm:$0xff] %vm23, 0.0
    %31 = vst.msk [vmem:[#allocation5 + $0x8] sm:$0xff] %vm23, 0.0
    %32 = vst [vmem:[#allocation6] sm:$0xff] 0.0
    %33 = vst [vmem:[#allocation6 + $0x8] sm:$0xff] 0.0
  $region21: #{robust_bart_forward.11} parent=0 // pred_fallthru
    _
  %v34 = vld [vmem:[%s0] sm:$0xf]
  %v35 = vld [vmem:[%s0 + $0x4] sm:$0xf]
  %v36 = vld [vmem:[%s1] sm:$0xf]
  %v37 = vld [vmem:[%s1 + $0x4] sm:$0xf]
  %v38 = vld [vmem:[%s1 + $0x8] sm:$0xf]
  %v39 = vld [vmem:[%s1 + $0xc] sm:$0xf]
  %v40 = vld [vmem:[%s1 + $0x10] sm:$0xf]
  %v41 = vld [vmem:[%s1 + $0x14] sm:$0xf]
  %v42 = vld [vmem:[%s1 + $0x18] sm:$0xf]
  %v43 = vld [vmem:[%s1 + $0x1c] sm:$0xf]
  %v44 = vld [vmem:[%s1 + $0x20] sm:$0xf]
  %v45 = vld [vmem:[%s1 + $0x24] sm:$0xf]
  %v46 = vld [vmem:[%s1 + $0x28] sm:$0xf]
  %v47 = vld [vmem:[%s1 + $0x2c] sm:$0xf]
  %v48 = vld [vmem:[%s1 + $0x30] sm:$0xf]
  %v49 = vld [vmem:[%s1 + $0x34] sm:$0xf]
  %v50 = vld [vmem:[%s1 + $0x38] sm:$0xf]
  %v51 = vld [vmem:[%s1 + $0x3c] sm:$0xf]
  %v52 = vld [vmem:[%s1 + $0x40] sm:$0xf]
  %v53 = vld [vmem:[%s1 + $0x44] sm:$0xf]
  %v54 = vld [vmem:[%s1 + $0x48] sm:$0xf]
  %v55 = vld [vmem:[%s1 + $0x4c] sm:$0xf]
  %v56 = vld [vmem:[%s1 + $0x50] sm:$0xf]
  %v57 = vld [vmem:[%s1 + $0x54] sm:$0xf]
  %v58 = vld [vmem:[%s1 + $0x58] sm:$0xf]
  %v59 = vld [vmem:[%s1 + $0x5c] sm:$0xf]
  %v60 = vld [vmem:[%s1 + $0x60] sm:$0xf]
  %v61 = vld [vmem:[%s1 + $0x64] sm:$0xf]
  %v62 = vld [vmem:[%s1 + $0x68] sm:$0xf]
  %v63 = vld [vmem:[%s1 + $0x6c] sm:$0xf]
  %v64 = vld [vmem:[%s1 + $0x70] sm:$0xf]
  %v65 = vld [vmem:[%s1 + $0x74] sm:$0xf]
  %v66 = vld [vmem:[%s1 + $0x78] sm:$0xf]
  %v67 = vld [vmem:[%s1 + $0x7c] sm:$0xf]
  %v70 = vunpack.c.l.b16 %v34
  %v71 = vunpack.c.l.b16 %v35
  %v72 = vpack.c.b16 %v71, %v70
  %v106 = vunpack.c.l.b16 %v36
  %v107 = vunpack.c.l.b16 %v37
  %v108 = vunpack.c.l.b16 %v38
  %v109 = vunpack.c.l.b16 %v39
  %v110 = vunpack.c.l.b16 %v40
  %v111 = vunpack.c.l.b16 %v41
  %v112 = vunpack.c.l.b16 %v42
  %v113 = vunpack.c.l.b16 %v43
  %v114 = vunpack.c.l.b16 %v44
  %v115 = vunpack.c.l.b16 %v45
  %v116 = vunpack.c.l.b16 %v46
  %v117 = vunpack.c.l.b16 %v47
  %v118 = vunpack.c.l.b16 %v48
  %v119 = vunpack.c.l.b16 %v49
  %v120 = vunpack.c.l.b16 %v50
  %v121 = vunpack.c.l.b16 %v51
  %v122 = vunpack.c.l.b16 %v52
  %v123 = vunpack.c.l.b16 %v53
  %v124 = vunpack.c.l.b16 %v54
  %v125 = vunpack.c.l.b16 %v55
  %v126 = vunpack.c.l.b16 %v56
  %v127 = vunpack.c.l.b16 %v57
  %v128 = vunpack.c.l.b16 %v58
  %v129 = vunpack.c.l.b16 %v59
  %v130 = vunpack.c.l.b16 %v60
  %v131 = vunpack.c.l.b16 %v61
  %v132 = vunpack.c.l.b16 %v62
  %v133 = vunpack.c.l.b16 %v63
  %v134 = vunpack.c.l.b16 %v64
  %v135 = vunpack.c.l.b16 %v65
  %v136 = vunpack.c.l.b16 %v66
  %v137 = vunpack.c.l.b16 %v67
  %v138 = vpack.c.b16 %v107, %v106
  %v139 = vpack.c.b16 %v109, %v108
  %v140 = vpack.c.b16 %v111, %v110
  %v141 = vpack.c.b16 %v113, %v112
  %v142 = vpack.c.b16 %v115, %v114
  %v143 = vpack.c.b16 %v117, %v116
  %v144 = vpack.c.b16 %v119, %v118
  %v145 = vpack.c.b16 %v121, %v120
  %v146 = vpack.c.b16 %v123, %v122
  %v147 = vpack.c.b16 %v125, %v124
  %v148 = vpack.c.b16 %v127, %v126
  %v149 = vpack.c.b16 %v129, %v128
  %v150 = vpack.c.b16 %v131, %v130
  %v151 = vpack.c.b16 %v133, %v132
  %v152 = vpack.c.b16 %v135, %v134
  %v153 = vpack.c.b16 %v137, %v136
  %170 = vmatpush.bf16.xpose.msra.mxu0 %v145
  %171 = vmatpush.bf16.xpose.msra.mxu0 %v144
  %172 = vmatpush.bf16.xpose.msra.mxu0 %v143
  %173 = vmatpush.bf16.xpose.msra.mxu0 %v142
  %174 = vmatpush.bf16.xpose.msra.mxu0 %v141
  %175 = vmatpush.bf16.xpose.msra.mxu0 %v140
  %176 = vmatpush.bf16.xpose.msra.mxu0 %v139
  %177 = vmatpush.bf16.xpose.msra.mxu0 %v138
  %178 = vmatmul.bf16.gmra.mxu0 %v72
  %v179 = vpop.f32.mrf.mxu0
  %v180 = vadd.f32 0.0, %v179
  %v181 = vpop.f32.mrf.mxu0
  %v182 = vadd.f32 0.0, %v181
  %183 = vdwg.mxu0
  %184 = vmatpush.bf16.xpose.msra.mxu0 %v153
  %185 = vmatpush.bf16.xpose.msra.mxu0 %v152
  %186 = vmatpush.bf16.xpose.msra.mxu0 %v151
  %187 = vmatpush.bf16.xpose.msra.mxu0 %v150
  %188 = vmatpush.bf16.xpose.msra.mxu0 %v149
  %189 = vmatpush.bf16.xpose.msra.mxu0 %v148
  %190 = vmatpush.bf16.xpose.msra.mxu0 %v147
  %191 = vmatpush.bf16.xpose.msra.mxu0 %v146
  %192 = vmatmul.bf16.gmra.mxu0 %v72
  %v193 = vpop.f32.mrf.mxu0
  %v194 = vadd.f32 0.0, %v193
  %v195 = vpop.f32.mrf.mxu0
  %v196 = vadd.f32 0.0, %v195
  %197 = vdwg.mxu0
  %s198 = smul.u32 0, 256
  %v199 = vlaneseq
  %v200 = vand.u32 %v199, 127
  %v201 = vadd.s32 %v200, 128
  %v202 = vstv %s198
  %v203 = vadd.s32 %v202, %v200
  %v204 = vadd.s32 %v202, %v201
  %vm205 = vcmp.lt.s32.totalorder %v203, 256
  %vm206 = vcmp.lt.s32.totalorder %v204, 256
  %v207 = vsel %vm205, %v180, -1e+30
  %v208 = vsel %vm206, %v194, -1e+30
  %v209 = vsel %vm205, %v182, -1e+30
  %v210 = vsel %vm206, %v196, -1e+30
  %v211 = vld [vmem:[%s3] sm:$0xff]
  %v212 = vld [vmem:[%s3 + $0x8] sm:$0xff]
  %213 = vset.pattern.permute.xlu0 0
  %214 = vperm.xlu0 %213, %v211
  %v215 = vpop.permute.xlu0 %214
  %216 = vset.pattern.permute.xlu0 0
  %217 = vperm.xlu0 %216, %v212
  %v218 = vpop.permute.xlu0 %217
  %vm219 = vcmp.eq.s32.totalorder %v203, %v215
  %vm220 = vcmp.eq.s32.totalorder %v204, %v215
  %vm221 = vcmp.eq.s32.totalorder %v203, %v218
  %vm222 = vcmp.eq.s32.totalorder %v204, %v218
  %v223 = vsel %vm219, 1, 0
  %v224 = vsel %vm220, 1, 0
  %v225 = vsel %vm221, 1, 0
  %v226 = vsel %vm222, 1, 0
  %v227 = vcvt.s32.f32 %v223
  %v228 = vcvt.s32.f32 %v224
  %v229 = vcvt.s32.f32 %v225
  %v230 = vcvt.s32.f32 %v226
  %v231 = vld [vmem:[#allocation2] sm:$0xff]
  %v232 = vld [vmem:[#allocation2 + $0x8] sm:$0xff]
  %v233 = vmax.f32 %v207, %v208
  %234 = vmax.xlane.f32.xlu0 %v233
  %v235 = vpop.xlane.xlu0 %234
  %v236 = vmax.f32 %v209, %v210
  %237 = vmax.xlane.f32.xlu0 %v236
  %v238 = vpop.xlane.xlu0 %237
  %v239 = vmax.f32 %v231, %v235
  %v240 = vmax.f32 %v232, %v238
  %v241 = vsub.f32 %v231, %v239
  %v242 = vsub.f32 %v232, %v240
  %v243 = vmul.f32 %v241, 1.442695
  %v244 = vpow.pop %v243
  %v245 = vmul.f32 %v242, 1.442695
  %v246 = vpow.pop %v245
  %248 = vset.pattern.permute.xlu0 0
  %249 = vperm.xlu0 %248, %v239
  %v250 = vpop.permute.xlu0 %249
  %253 = vset.pattern.permute.xlu0 0
  %254 = vperm.xlu0 %253, %v240
  %v255 = vpop.permute.xlu0 %254
  %v257 = vsub.f32 %v207, %v250
  %v258 = vsub.f32 %v208, %v250
  %v259 = vsub.f32 %v209, %v255
  %v260 = vsub.f32 %v210, %v255
  %v261 = vmul.f32 %v257, 1.442695
  %v262 = vpow.pop %v261
  %v263 = vmul.f32 %v258, 1.442695
  %v264 = vpow.pop %v263
  %v265 = vmul.f32 %v259, 1.442695
  %v266 = vpow.pop %v265
  %v267 = vmul.f32 %v260, 1.442695
  %v268 = vpow.pop %v267
  %v269 = vld [vmem:[#allocation3] sm:$0xff]
  %v270 = vld [vmem:[#allocation3 + $0x8] sm:$0xff]
  %v271 = vmul.f32 %v269, %v244
  %v272 = vmul.f32 %v270, %v246
  %v273 = vadd.f32 %v262, %v264
  %274 = vadd.xlane.f32.xlu0 %v273
  %v275 = vpop.xlane.xlu0 %274
  %v276 = vadd.f32 %v266, %v268
  %277 = vadd.xlane.f32.xlu0 %v276
  %v278 = vpop.xlane.xlu0 %277
  %v279 = vadd.f32 %v271, %v275
  %v280 = vadd.f32 %v272, %v278
  %vm281 = vcmask 7168
  %282 = vst.msk [vmem:[#allocation3] sm:$0xff] %vm281, %v279
  %283 = vst.msk [vmem:[#allocation3 + $0x8] sm:$0xff] %vm281, %v280
  %v284 = vld [vmem:[#allocation4] sm:$0xff]
  %v285 = vld [vmem:[#allocation4 + $0x8] sm:$0xff]
  %v286 = vmul.f32 %v284, %v244
  %v287 = vmul.f32 %v285, %v246
  %v288 = vld [vmem:[%s2] sm:$0x3]
  %v290 = vperm.slane %v288, 0
  %v291 = vperm.slane %v288, 1
  %v294 = vmul.f32 %v262, %v290
  %v295 = vmul.f32 %v264, %v291
  %v296 = vmul.f32 %v266, %v290
  %v297 = vmul.f32 %v268, %v291
  %v298 = vadd.f32 %v294, %v295
  %299 = vadd.xlane.f32.xlu0 %v298
  %v300 = vpop.xlane.xlu0 %299
  %v301 = vadd.f32 %v296, %v297
  %302 = vadd.xlane.f32.xlu0 %v301
  %v303 = vpop.xlane.xlu0 %302
  %v304 = vadd.f32 %v286, %v300
  %v305 = vadd.f32 %v287, %v303
  %306 = vst.msk [vmem:[#allocation4] sm:$0xff] %vm281, %v304
  %307 = vst.msk [vmem:[#allocation4 + $0x8] sm:$0xff] %vm281, %v305
  %v308 = vld [vmem:[#allocation5] sm:$0xff]
  %v309 = vld [vmem:[#allocation5 + $0x8] sm:$0xff]
  %v310 = vmul.f32 %v227, %v207
  %v311 = vmul.f32 %v228, %v208
  %v312 = vmul.f32 %v229, %v209
  %v313 = vmul.f32 %v230, %v210
  %v314 = vadd.f32 %v310, %v311
  %315 = vadd.xlane.f32.xlu0 %v314
  %v316 = vpop.xlane.xlu0 %315
  %v317 = vadd.f32 %v312, %v313
  %318 = vadd.xlane.f32.xlu0 %v317
  %v319 = vpop.xlane.xlu0 %318
  %v320 = vadd.f32 %v308, %v316
  %v321 = vadd.f32 %v309, %v319
  %322 = vst.msk [vmem:[#allocation5] sm:$0xff] %vm281, %v320
  %323 = vst.msk [vmem:[#allocation5 + $0x8] sm:$0xff] %vm281, %v321
  %v324 = vld [vmem:[#allocation6] sm:$0xff]
  %v325 = vld [vmem:[#allocation6 + $0x8] sm:$0xff]
  %327 = vset.pattern.permute.xlu0 0
  %328 = vperm.xlu0 %327, %v244
  %v329 = vpop.permute.xlu0 %328
  %332 = vset.pattern.permute.xlu0 0
  %333 = vperm.xlu0 %332, %v246
  %v334 = vpop.permute.xlu0 %333
  %v336 = vmul.f32 %v324, %v329
  %v337 = vmul.f32 %v325, %v334
  %v338 = vpack.c.bf16 %v266, %v262
  %v339 = vpack.c.bf16 %v268, %v264
  %340 = vmatpush.bf16.msra.mxu0 %v145
  %341 = vmatpush.bf16.msra.mxu0 %v144
  %342 = vmatpush.bf16.msra.mxu0 %v143
  %343 = vmatpush.bf16.msra.mxu0 %v142
  %344 = vmatpush.bf16.msra.mxu0 %v141
  %345 = vmatpush.bf16.msra.mxu0 %v140
  %346 = vmatpush.bf16.msra.mxu0 %v139
  %347 = vmatpush.bf16.msra.mxu0 %v138
  %348 = vmatmul.bf16.gmra.mxu0 %v338
  %v349 = vpop.f32.mrf.mxu0
  %v350 = vadd.f32 0.0, %v349
  %v351 = vpop.f32.mrf.mxu0
  %v352 = vadd.f32 0.0, %v351
  %353 = vdwg.mxu0
  %354 = vmatpush.bf16.msra.mxu0 %v153
  %355 = vmatpush.bf16.msra.mxu0 %v152
  %356 = vmatpush.bf16.msra.mxu0 %v151
  %357 = vmatpush.bf16.msra.mxu0 %v150
  %358 = vmatpush.bf16.msra.mxu0 %v149
  %359 = vmatpush.bf16.msra.mxu0 %v148
  %360 = vmatpush.bf16.msra.mxu0 %v147
  %361 = vmatpush.bf16.msra.mxu0 %v146
  %362 = vmatmul.bf16.gmra.mxu0 %v339
  %v363 = vpop.f32.mrf.mxu0
  %v364 = vadd.f32 %v350, %v363
  %v365 = vpop.f32.mrf.mxu0
  %v366 = vadd.f32 %v352, %v365
  %367 = vdwg.mxu0
  %v368 = vadd.f32 %v336, %v364
  %v369 = vadd.f32 %v337, %v366
  %370 = vst [vmem:[#allocation6] sm:$0xff] %v368
  %371 = vst [vmem:[#allocation6 + $0x8] sm:$0xff] %v369
  %372 = vst.msk [vmem:[#allocation2] sm:$0xff] %vm281, %v239
  %373 = vst.msk [vmem:[#allocation2 + $0x8] sm:$0xff] %vm281, %v240
  // Predicated region
  $region22: #{robust_bart_forward.11} parent=0 // pred_check
    %p374 = pneg %p19
  $region23: #{robust_bart_forward.11} parent=0 // pred_check_branch
    %376 = sbr.rel (%p374) target = $region25
  $region24: #{robust_bart_forward.11} parent=0 // pred_region
    %v377 = vld [vmem:[#allocation2] sm:$0xff]
    %v378 = vld [vmem:[#allocation2 + $0x8] sm:$0xff]
    %v379 = vld [vmem:[#allocation4] sm:$0xff]
    %v380 = vld [vmem:[#allocation4 + $0x8] sm:$0xff]
    %v381 = vlog2.pop %v379
    %v382 = vmul.f32 %v381, 0.6931472
    %v383 = vlog2.pop %v380
    %v384 = vmul.f32 %v383, 0.6931472
    %v385 = vadd.f32 %v377, %v382
    %v386 = vadd.f32 %v378, %v384
    %v387 = vld [vmem:[#allocation5] sm:$0xff]
    %v388 = vld [vmem:[#allocation5 + $0x8] sm:$0xff]
    %v389 = vsub.f32 %v385, %v387
    %v390 = vsub.f32 %v386, %v388
    %391 = vst.msk [vmem:[%s4] sm:$0xff] %vm281, %v389
    %392 = vst.msk [vmem:[%s4 + $0x8] sm:$0xff] %vm281, %v390
    %v393 = vld [vmem:[#allocation3] sm:$0xff]
    %v394 = vld [vmem:[#allocation3 + $0x8] sm:$0xff]
    %v395 = vrcp.pop %v393
    %v396 = vrcp.pop %v394
    %v397 = vld [vmem:[#allocation6] sm:$0xff]
    %v398 = vld [vmem:[#allocation6 + $0x8] sm:$0xff]
    %400 = vset.pattern.permute.xlu0 0
    %401 = vperm.xlu0 %400, %v395
    %v402 = vpop.permute.xlu0 %401
    %405 = vset.pattern.permute.xlu0 0
    %406 = vperm.xlu0 %405, %v396
    %v407 = vpop.permute.xlu0 %406
    %v409 = vmul.f32 %v397, %v402
    %v410 = vmul.f32 %v398, %v407
    %v411 = vpack.c.bf16 %v409, %v409
    %v412 = vpack.c.bf16 %v410, %v410
    %413 = vst [vmem:[%s5] sm:$0xf] %v411
    %414 = vst [vmem:[%s5 + $0x4] sm:$0xf] %v412
  $region25: #{robust_bart_forward.11} parent=0 // pred_fallthru
    _
  // Predicated region
  $region26: #{robust_bart_forward.11} parent=0 // pred_check
    _
  $region27: #{robust_bart_forward.11} parent=0 // pred_check_branch
    %416 = sbr.rel (0) target = $region29
  $region28: #{robust_bart_forward.11} parent=0 // pred_region
    _
  $region29: #{robust_bart_forward.11} parent=0 // pred_fallthru
    _
  // Predicated region
  $region30: #{robust_bart_forward.11} parent=0 // pred_check
    _
  $region31: #{robust_bart_forward.11} parent=0 // pred_check_branch
    %418 = sbr.rel (0) target = $region33
  $region32: #{robust_bart_forward.11} parent=0 // pred_region
    _
  $region33: #{robust_bart_forward.11} parent=0 // pred_fallthru
    _
  // Predicated region
  $region34: #{robust_bart_forward.11} parent=0 // pred_check
    _
  $region35: #{robust_bart_forward.11} parent=0 // pred_check_branch
    %420 = sbr.rel (0) target = $region37
  $region36: #{robust_bart_forward.11} parent=0 // pred_region
    _
  $region37: #{robust_bart_forward.11} parent=0 // pred_fallthru
    _
  // Predicated region
  $region38: #{robust_bart_forward.11} parent=0 // pred_check
    _
  $region39: #{robust_bart_forward.11} parent=0 // pred_check_branch
    %422 = sbr.rel (0) target = $region41
  $region40: #{robust_bart_forward.11} parent=0 // pred_region
    _
  $region41: #{robust_bart_forward.11} parent=0 // pred_fallthru
    _

// kernel: robust_bart_forward.14
$region0: #{robust_bart_forward.14}
  #allocation0 [shape = 'u32[]', space=smem, size = 0x4, offset = 0x4, fixed_abs, tag = 'smem constant byte address 0x4 - core index']
  #allocation1 [shape = 'u32[72,128]{1,0:T(1,128)}', space=vmem, size = 0x9000, scoped, tag = 'internal scratch']
  #allocation2 [shape = 'f32[16,1]{1,0:T(8,128)}', space=vmem, size = 0x2000, scoped, tag = 'scratch operand']
  #allocation3 [shape = 'f32[16,1]{1,0:T(8,128)}', space=vmem, size = 0x2000, scoped, tag = 'scratch operand']
  #allocation4 [shape = 'f32[16,128]{1,0:T(8,128)}', space=vmem, size = 0x2000, scoped, tag = 'scratch operand']
  #allocation5 [shape = 'f32[16,1]{1,0:T(8,128)}', space=vmem, size = 0x2000, scoped, tag = 'scratch operand']
  #allocation6 [shape = 'f32[16,1]{1,0:T(8,128)}', space=vmem, size = 0x2000, scoped, tag = 'scratch operand']
  #allocation7 [shape = 'f32[16,128]{1,0:T(8,128)}', space=vmem, size = 0x2000, scoped, tag = 'scratch operand']
  %s0 = inlined_call_operand.vmem [shape: bf16[16,128], index: 0, kind: input, shape index: {}]
  %s1 = inlined_call_operand.vmem [shape: bf16[16,128], index: 1, kind: input, shape index: {}]
  %s2 = inlined_call_operand.vmem [shape: bf16[256,128], index: 2, kind: input, shape index: {}]
  %s3 = inlined_call_operand.vmem [shape: f32[1,256], index: 3, kind: input, shape index: {}]
  %s4 = inlined_call_operand.vmem [shape: f32[16,1], index: 4, kind: input, shape index: {}]
  %s5 = inlined_call_operand.vmem [shape: bf16[16,128], index: 5, kind: output, shape index: {}]
  %s6 = sld [smem:[#allocation0]]
  $region38: #{robust_bart_forward.14} parent=0
    _
  %s8 = ssub.s32 1, %s6
  %s9 = scalar_select 0, %s8, %s6
  // Predicated region
  $region2: #{robust_bart_forward.14} parent=0 // pred_check
    _
  $region3: #{robust_bart_forward.14} parent=0 // pred_check_branch
    %11 = sbr.rel (0) target = $region5
  $region4: #{robust_bart_forward.14} parent=0 // pred_region
    _
  $region5: #{robust_bart_forward.14} parent=0 // pred_fallthru
    _
  // Predicated region
  $region6: #{robust_bart_forward.14} parent=0 // pred_check
    _
  $region7: #{robust_bart_forward.14} parent=0 // pred_check_branch
    %13 = sbr.rel (0) target = $region9
  $region8: #{robust_bart_forward.14} parent=0 // pred_region
    _
  $region9: #{robust_bart_forward.14} parent=0 // pred_fallthru
    _
  // Predicated region
  $region10: #{robust_bart_forward.14} parent=0 // pred_check
    _
  $region11: #{robust_bart_forward.14} parent=0 // pred_check_branch
    %15 = sbr.rel (0) target = $region13
  $region12: #{robust_bart_forward.14} parent=0 // pred_region
    _
  $region13: #{robust_bart_forward.14} parent=0 // pred_fallthru
    _
  // Predicated region
  $region14: #{robust_bart_forward.14} parent=0 // pred_check
    _
  $region15: #{robust_bart_forward.14} parent=0 // pred_check_branch
    %17 = sbr.rel (0) target = $region17
  $region16: #{robust_bart_forward.14} parent=0 // pred_region
    _
  $region17: #{robust_bart_forward.14} parent=0 // pred_fallthru
    _
  // Predicated region
  $region18: #{robust_bart_forward.14} parent=0 // pred_check
    _
  $region19: #{robust_bart_forward.14} parent=0 // pred_check_branch
    %19 = sbr.rel (0) target = $region21
  $region20: #{robust_bart_forward.14} parent=0 // pred_region
    _
  $region21: #{robust_bart_forward.14} parent=0 // pred_fallthru
    _
  %p20 = scmp.eq.s32.totalorder 0, 0
  // Predicated region
  $region22: #{robust_bart_forward.14} parent=0 // pred_check
    %p21 = pneg %p20
  $region23: #{robust_bart_forward.14} parent=0 // pred_check_branch
    %23 = sbr.rel (%p21) target = $region25
  $region24: #{robust_bart_forward.14} parent=0 // pred_region
    %vm24 = vcmask 7168
    %25 = vst.msk [vmem:[#allocation2] sm:$0xff] %vm24, -1e+30
    %26 = vst.msk [vmem:[#allocation2 + $0x8] sm:$0xff] %vm24, -1e+30
    %27 = vst.msk [vmem:[#allocation5] sm:$0xff] %vm24, -1e+30
    %28 = vst.msk [vmem:[#allocation5 + $0x8] sm:$0xff] %vm24, -1e+30
    %29 = vst.msk [vmem:[#allocation3] sm:$0xff] %vm24, 0.0
    %30 = vst.msk [vmem:[#allocation3 + $0x8] sm:$0xff] %vm24, 0.0
    %31 = vst.msk [vmem:[#allocation6] sm:$0xff] %vm24, 0.0
    %32 = vst.msk [vmem:[#allocation6 + $0x8] sm:$0xff] %vm24, 0.0
    %33 = vst [vmem:[#allocation4] sm:$0xff] 0.0
    %34 = vst [vmem:[#allocation4 + $0x8] sm:$0xff] 0.0
    %35 = vst [vmem:[#allocation7] sm:$0xff] 0.0
    %36 = vst [vmem:[#allocation7 + $0x8] sm:$0xff] 0.0
  $region25: #{robust_bart_forward.14} parent=0 // pred_fallthru
    _
  %v37 = vld [vmem:[%s2] sm:$0xf]
  %v38 = vld [vmem:[%s2 + $0x4] sm:$0xf]
  %v39 = vld [vmem:[%s2 + $0x8] sm:$0xf]
  %v40 = vld [vmem:[%s2 + $0xc] sm:$0xf]
  %v41 = vld [vmem:[%s2 + $0x10] sm:$0xf]
  %v42 = vld [vmem:[%s2 + $0x14] sm:$0xf]
  %v43 = vld [vmem:[%s2 + $0x18] sm:$0xf]
  %v44 = vld [vmem:[%s2 + $0x1c] sm:$0xf]
  %v45 = vld [vmem:[%s2 + $0x20] sm:$0xf]
  %v46 = vld [vmem:[%s2 + $0x24] sm:$0xf]
  %v47 = vld [vmem:[%s2 + $0x28] sm:$0xf]
  %v48 = vld [vmem:[%s2 + $0x2c] sm:$0xf]
  %v49 = vld [vmem:[%s2 + $0x30] sm:$0xf]
  %v50 = vld [vmem:[%s2 + $0x34] sm:$0xf]
  %v51 = vld [vmem:[%s2 + $0x38] sm:$0xf]
  %v52 = vld [vmem:[%s2 + $0x3c] sm:$0xf]
  %v53 = vld [vmem:[%s2 + $0x40] sm:$0xf]
  %v54 = vld [vmem:[%s2 + $0x44] sm:$0xf]
  %v55 = vld [vmem:[%s2 + $0x48] sm:$0xf]
  %v56 = vld [vmem:[%s2 + $0x4c] sm:$0xf]
  %v57 = vld [vmem:[%s2 + $0x50] sm:$0xf]
  %v58 = vld [vmem:[%s2 + $0x54] sm:$0xf]
  %v59 = vld [vmem:[%s2 + $0x58] sm:$0xf]
  %v60 = vld [vmem:[%s2 + $0x5c] sm:$0xf]
  %v61 = vld [vmem:[%s2 + $0x60] sm:$0xf]
  %v62 = vld [vmem:[%s2 + $0x64] sm:$0xf]
  %v63 = vld [vmem:[%s2 + $0x68] sm:$0xf]
  %v64 = vld [vmem:[%s2 + $0x6c] sm:$0xf]
  %v65 = vld [vmem:[%s2 + $0x70] sm:$0xf]
  %v66 = vld [vmem:[%s2 + $0x74] sm:$0xf]
  %v67 = vld [vmem:[%s2 + $0x78] sm:$0xf]
  %v68 = vld [vmem:[%s2 + $0x7c] sm:$0xf]
  %v69 = vld [vmem:[%s0] sm:$0xf]
  %v70 = vld [vmem:[%s0 + $0x4] sm:$0xf]
  %v73 = vunpack.c.l.b16 %v69
  %v74 = vunpack.c.l.b16 %v70
  %v75 = vpack.c.b16 %v74, %v73
  %v109 = vunpack.c.l.b16 %v37
  %v110 = vunpack.c.l.b16 %v38
  %v111 = vunpack.c.l.b16 %v39
  %v112 = vunpack.c.l.b16 %v40
  %v113 = vunpack.c.l.b16 %v41
  %v114 = vunpack.c.l.b16 %v42
  %v115 = vunpack.c.l.b16 %v43
  %v116 = vunpack.c.l.b16 %v44
  %v117 = vunpack.c.l.b16 %v45
  %v118 = vunpack.c.l.b16 %v46
  %v119 = vunpack.c.l.b16 %v47
  %v120 = vunpack.c.l.b16 %v48
  %v121 = vunpack.c.l.b16 %v49
  %v122 = vunpack.c.l.b16 %v50
  %v123 = vunpack.c.l.b16 %v51
  %v124 = vunpack.c.l.b16 %v52
  %v125 = vunpack.c.l.b16 %v53
  %v126 = vunpack.c.l.b16 %v54
  %v127 = vunpack.c.l.b16 %v55
  %v128 = vunpack.c.l.b16 %v56
  %v129 = vunpack.c.l.b16 %v57
  %v130 = vunpack.c.l.b16 %v58
  %v131 = vunpack.c.l.b16 %v59
  %v132 = vunpack.c.l.b16 %v60
  %v133 = vunpack.c.l.b16 %v61
  %v134 = vunpack.c.l.b16 %v62
  %v135 = vunpack.c.l.b16 %v63
  %v136 = vunpack.c.l.b16 %v64
  %v137 = vunpack.c.l.b16 %v65
  %v138 = vunpack.c.l.b16 %v66
  %v139 = vunpack.c.l.b16 %v67
  %v140 = vunpack.c.l.b16 %v68
  %v141 = vpack.c.b16 %v110, %v109
  %v142 = vpack.c.b16 %v112, %v111
  %v143 = vpack.c.b16 %v114, %v113
  %v144 = vpack.c.b16 %v116, %v115
  %v145 = vpack.c.b16 %v118, %v117
  %v146 = vpack.c.b16 %v120, %v119
  %v147 = vpack.c.b16 %v122, %v121
  %v148 = vpack.c.b16 %v124, %v123
  %v149 = vpack.c.b16 %v126, %v125
  %v150 = vpack.c.b16 %v128, %v127
  %v151 = vpack.c.b16 %v130, %v129
  %v152 = vpack.c.b16 %v132, %v131
  %v153 = vpack.c.b16 %v134, %v133
  %v154 = vpack.c.b16 %v136, %v135
  %v155 = vpack.c.b16 %v138, %v137
  %v156 = vpack.c.b16 %v140, %v139
  %173 = vmatpush.bf16.xpose.msra.mxu0 %v148
  %174 = vmatpush.bf16.xpose.msra.mxu0 %v147
  %175 = vmatpush.bf16.xpose.msra.mxu0 %v146
  %176 = vmatpush.bf16.xpose.msra.mxu0 %v145
  %177 = vmatpush.bf16.xpose.msra.mxu0 %v144
  %178 = vmatpush.bf16.xpose.msra.mxu0 %v143
  %179 = vmatpush.bf16.xpose.msra.mxu0 %v142
  %180 = vmatpush.bf16.xpose.msra.mxu0 %v141
  %181 = vmatmul.bf16.gmra.mxu0 %v75
  %v182 = vpop.f32.mrf.mxu0
  %v183 = vadd.f32 0.0, %v182
  %v184 = vpop.f32.mrf.mxu0
  %v185 = vadd.f32 0.0, %v184
  %186 = vdwg.mxu0
  %187 = vmatpush.bf16.xpose.msra.mxu0 %v156
  %188 = vmatpush.bf16.xpose.msra.mxu0 %v155
  %189 = vmatpush.bf16.xpose.msra.mxu0 %v154
  %190 = vmatpush.bf16.xpose.msra.mxu0 %v153
  %191 = vmatpush.bf16.xpose.msra.mxu0 %v152
  %192 = vmatpush.bf16.xpose.msra.mxu0 %v151
  %193 = vmatpush.bf16.xpose.msra.mxu0 %v150
  %194 = vmatpush.bf16.xpose.msra.mxu0 %v149
  %195 = vmatmul.bf16.gmra.mxu0 %v75
  %v196 = vpop.f32.mrf.mxu0
  %v197 = vadd.f32 0.0, %v196
  %v198 = vpop.f32.mrf.mxu0
  %v199 = vadd.f32 0.0, %v198
  %200 = vdwg.mxu0
  %v201 = vld [vmem:[%s1] sm:$0xf]
  %v202 = vld [vmem:[%s1 + $0x4] sm:$0xf]
  %v203 = vld [vmem:[%s3] sm:$0x3]
  %v205 = vperm.slane %v203, 0
  %v206 = vperm.slane %v203, 1
  %v211 = vunpack.c.l.b16 %v201
  %v212 = vunpack.c.l.b16 %v202
  %v213 = vpack.c.b16 %v212, %v211
  %215 = vmatpush.bf16.xpose.msra.mxu0 %v148
  %216 = vmatpush.bf16.xpose.msra.mxu0 %v147
  %217 = vmatpush.bf16.xpose.msra.mxu0 %v146
  %218 = vmatpush.bf16.xpose.msra.mxu0 %v145
  %219 = vmatpush.bf16.xpose.msra.mxu0 %v144
  %220 = vmatpush.bf16.xpose.msra.mxu0 %v143
  %221 = vmatpush.bf16.xpose.msra.mxu0 %v142
  %222 = vmatpush.bf16.xpose.msra.mxu0 %v141
  %223 = vmatmul.bf16.gmra.mxu0 %v213
  %v224 = vpop.f32.mrf.mxu0
  %v225 = vadd.f32 %v205, %v224
  %v226 = vpop.f32.mrf.mxu0
  %v227 = vadd.f32 %v205, %v226
  %228 = vdwg.mxu0
  %229 = vmatpush.bf16.xpose.msra.mxu0 %v156
  %230 = vmatpush.bf16.xpose.msra.mxu0 %v155
  %231 = vmatpush.bf16.xpose.msra.mxu0 %v154
  %232 = vmatpush.bf16.xpose.msra.mxu0 %v153
  %233 = vmatpush.bf16.xpose.msra.mxu0 %v152
  %234 = vmatpush.bf16.xpose.msra.mxu0 %v151
  %235 = vmatpush.bf16.xpose.msra.mxu0 %v150
  %236 = vmatpush.bf16.xpose.msra.mxu0 %v149
  %237 = vmatmul.bf16.gmra.mxu0 %v213
  %v238 = vpop.f32.mrf.mxu0
  %v239 = vadd.f32 %v206, %v238
  %v240 = vpop.f32.mrf.mxu0
  %v241 = vadd.f32 %v206, %v240
  %242 = vdwg.mxu0
  %s243 = smul.u32 0, 256
  %v244 = vlaneseq
  %v245 = vand.u32 %v244, 127
  %v246 = vadd.s32 %v245, 128
  %v247 = vstv %s243
  %v248 = vadd.s32 %v247, %v245
  %v249 = vadd.s32 %v247, %v246
  %vm250 = vcmp.lt.s32.totalorder %v248, 256
  %vm251 = vcmp.lt.s32.totalorder %v249, 256
  %v252 = vsel %vm250, %v183, -1e+30
  %v253 = vsel %vm251, %v197, -1e+30
  %v254 = vsel %vm250, %v185, -1e+30
  %v255 = vsel %vm251, %v199, -1e+30
  %v256 = vsel %vm250, %v225, -1e+30
  %v257 = vsel %vm251, %v239, -1e+30
  %v258 = vsel %vm250, %v227, -1e+30
  %v259 = vsel %vm251, %v241, -1e+30
  %v260 = vld [vmem:[#allocation2] sm:$0xff]
  %v261 = vld [vmem:[#allocation2 + $0x8] sm:$0xff]
  %v262 = vmax.f32 %v252, %v253
  %263 = vmax.xlane.f32.xlu0 %v262
  %v264 = vpop.xlane.xlu0 %263
  %v265 = vmax.f32 %v254, %v255
  %266 = vmax.xlane.f32.xlu0 %v265
  %v267 = vpop.xlane.xlu0 %266
  %v268 = vmax.f32 %v260, %v264
  %v269 = vmax.f32 %v261, %v267
  %v270 = vsub.f32 %v260, %v268
  %v271 = vsub.f32 %v261, %v269
  %v272 = vmul.f32 %v270, 1.442695
  %v273 = vpow.pop %v272
  %v274 = vmul.f32 %v271, 1.442695
  %v275 = vpow.pop %v274
  %277 = vset.pattern.permute.xlu0 0
  %278 = vperm.xlu0 %277, %v268
  %v279 = vpop.permute.xlu0 %278
  %282 = vset.pattern.permute.xlu0 0
  %283 = vperm.xlu0 %282, %v269
  %v284 = vpop.permute.xlu0 %283
  %v286 = vsub.f32 %v252, %v279
  %v287 = vsub.f32 %v253, %v279
  %v288 = vsub.f32 %v254, %v284
  %v289 = vsub.f32 %v255, %v284
  %v290 = vmul.f32 %v286, 1.442695
  %v291 = vpow.pop %v290
  %v292 = vmul.f32 %v287, 1.442695
  %v293 = vpow.pop %v292
  %v294 = vmul.f32 %v288, 1.442695
  %v295 = vpow.pop %v294
  %v296 = vmul.f32 %v289, 1.442695
  %v297 = vpow.pop %v296
  %v298 = vld [vmem:[#allocation3] sm:$0xff]
  %v299 = vld [vmem:[#allocation3 + $0x8] sm:$0xff]
  %v300 = vmul.f32 %v298, %v273
  %v301 = vmul.f32 %v299, %v275
  %v302 = vadd.f32 %v291, %v293
  %303 = vadd.xlane.f32.xlu0 %v302
  %v304 = vpop.xlane.xlu0 %303
  %v305 = vadd.f32 %v295, %v297
  %306 = vadd.xlane.f32.xlu0 %v305
  %v307 = vpop.xlane.xlu0 %306
  %v308 = vadd.f32 %v300, %v304
  %v309 = vadd.f32 %v301, %v307
  %vm310 = vcmask 7168
  %311 = vst.msk [vmem:[#allocation3] sm:$0xff] %vm310, %v308
  %312 = vst.msk [vmem:[#allocation3 + $0x8] sm:$0xff] %vm310, %v309
  %v313 = vld [vmem:[#allocation4] sm:$0xff]
  %v314 = vld [vmem:[#allocation4 + $0x8] sm:$0xff]
  %316 = vset.pattern.permute.xlu0 0
  %317 = vperm.xlu0 %316, %v273
  %v318 = vpop.permute.xlu0 %317
  %321 = vset.pattern.permute.xlu0 0
  %322 = vperm.xlu0 %321, %v275
  %v323 = vpop.permute.xlu0 %322
  %v325 = vmul.f32 %v313, %v318
  %v326 = vmul.f32 %v314, %v323
  %v327 = vpack.c.bf16 %v295, %v291
  %v328 = vpack.c.bf16 %v297, %v293
  %329 = vmatpush.bf16.msra.mxu0 %v148
  %330 = vmatpush.bf16.msra.mxu0 %v147
  %331 = vmatpush.bf16.msra.mxu0 %v146
  %332 = vmatpush.bf16.msra.mxu0 %v145
  %333 = vmatpush.bf16.msra.mxu0 %v144
  %334 = vmatpush.bf16.msra.mxu0 %v143
  %335 = vmatpush.bf16.msra.mxu0 %v142
  %336 = vmatpush.bf16.msra.mxu0 %v141
  %337 = vmatmul.bf16.gmra.mxu0 %v327
  %v338 = vpop.f32.mrf.mxu0
  %v339 = vadd.f32 0.0, %v338
  %v340 = vpop.f32.mrf.mxu0
  %v341 = vadd.f32 0.0, %v340
  %342 = vdwg.mxu0
  %343 = vmatpush.bf16.msra.mxu0 %v156
  %344 = vmatpush.bf16.msra.mxu0 %v155
  %345 = vmatpush.bf16.msra.mxu0 %v154
  %346 = vmatpush.bf16.msra.mxu0 %v153
  %347 = vmatpush.bf16.msra.mxu0 %v152
  %348 = vmatpush.bf16.msra.mxu0 %v151
  %349 = vmatpush.bf16.msra.mxu0 %v150
  %350 = vmatpush.bf16.msra.mxu0 %v149
  %351 = vmatmul.bf16.gmra.mxu0 %v328
  %v352 = vpop.f32.mrf.mxu0
  %v353 = vadd.f32 %v339, %v352
  %v354 = vpop.f32.mrf.mxu0
  %v355 = vadd.f32 %v341, %v354
  %356 = vdwg.mxu0
  %v357 = vadd.f32 %v325, %v353
  %v358 = vadd.f32 %v326, %v355
  %359 = vst [vmem:[#allocation4] sm:$0xff] %v357
  %360 = vst [vmem:[#allocation4 + $0x8] sm:$0xff] %v358
  %361 = vst.msk [vmem:[#allocation2] sm:$0xff] %vm310, %v268
  %362 = vst.msk [vmem:[#allocation2 + $0x8] sm:$0xff] %vm310, %v269
  %v363 = vld [vmem:[#allocation5] sm:$0xff]
  %v364 = vld [vmem:[#allocation5 + $0x8] sm:$0xff]
  %v365 = vmax.f32 %v256, %v257
  %366 = vmax.xlane.f32.xlu0 %v365
  %v367 = vpop.xlane.xlu0 %366
  %v368 = vmax.f32 %v258, %v259
  %369 = vmax.xlane.f32.xlu0 %v368
  %v370 = vpop.xlane.xlu0 %369
  %v371 = vmax.f32 %v363, %v367
  %v372 = vmax.f32 %v364, %v370
  %v373 = vsub.f32 %v363, %v371
  %v374 = vsub.f32 %v364, %v372
  %v375 = vmul.f32 %v373, 1.442695
  %v376 = vpow.pop %v375
  %v377 = vmul.f32 %v374, 1.442695
  %v378 = vpow.pop %v377
  %380 = vset.pattern.permute.xlu0 0
  %381 = vperm.xlu0 %380, %v371
  %v382 = vpop.permute.xlu0 %381
  %385 = vset.pattern.permute.xlu0 0
  %386 = vperm.xlu0 %385, %v372
  %v387 = vpop.permute.xlu0 %386
  %v389 = vsub.f32 %v256, %v382
  %v390 = vsub.f32 %v257, %v382
  %v391 = vsub.f32 %v258, %v387
  %v392 = vsub.f32 %v259, %v387
  %v393 = vmul.f32 %v389, 1.442695
  %v394 = vpow.pop %v393
  %v395 = vmul.f32 %v390, 1.442695
  %v396 = vpow.pop %v395
  %v397 = vmul.f32 %v391, 1.442695
  %v398 = vpow.pop %v397
  %v399 = vmul.f32 %v392, 1.442695
  %v400 = vpow.pop %v399
  %v401 = vld [vmem:[#allocation6] sm:$0xff]
  %v402 = vld [vmem:[#allocation6 + $0x8] sm:$0xff]
  %v403 = vmul.f32 %v401, %v376
  %v404 = vmul.f32 %v402, %v378
  %v405 = vadd.f32 %v394, %v396
  %406 = vadd.xlane.f32.xlu0 %v405
  %v407 = vpop.xlane.xlu0 %406
  %v408 = vadd.f32 %v398, %v400
  %409 = vadd.xlane.f32.xlu0 %v408
  %v410 = vpop.xlane.xlu0 %409
  %v411 = vadd.f32 %v403, %v407
  %v412 = vadd.f32 %v404, %v410
  %413 = vst.msk [vmem:[#allocation6] sm:$0xff] %vm310, %v411
  %414 = vst.msk [vmem:[#allocation6 + $0x8] sm:$0xff] %vm310, %v412
  %v415 = vld [vmem:[#allocation7] sm:$0xff]
  %v416 = vld [vmem:[#allocation7 + $0x8] sm:$0xff]
  %418 = vset.pattern.permute.xlu0 0
  %419 = vperm.xlu0 %418, %v376
  %v420 = vpop.permute.xlu0 %419
  %423 = vset.pattern.permute.xlu0 0
  %424 = vperm.xlu0 %423, %v378
  %v425 = vpop.permute.xlu0 %424
  %v427 = vmul.f32 %v415, %v420
  %v428 = vmul.f32 %v416, %v425
  %v429 = vpack.c.bf16 %v398, %v394
  %v430 = vpack.c.bf16 %v400, %v396
  %431 = vmatpush.bf16.msra.mxu0 %v148
  %432 = vmatpush.bf16.msra.mxu0 %v147
  %433 = vmatpush.bf16.msra.mxu0 %v146
  %434 = vmatpush.bf16.msra.mxu0 %v145
  %435 = vmatpush.bf16.msra.mxu0 %v144
  %436 = vmatpush.bf16.msra.mxu0 %v143
  %437 = vmatpush.bf16.msra.mxu0 %v142
  %438 = vmatpush.bf16.msra.mxu0 %v141
  %439 = vmatmul.bf16.gmra.mxu0 %v429
  %v440 = vpop.f32.mrf.mxu0
  %v441 = vadd.f32 0.0, %v440
  %v442 = vpop.f32.mrf.mxu0
  %v443 = vadd.f32 0.0, %v442
  %444 = vdwg.mxu0
  %445 = vmatpush.bf16.msra.mxu0 %v156
  %446 = vmatpush.bf16.msra.mxu0 %v155
  %447 = vmatpush.bf16.msra.mxu0 %v154
  %448 = vmatpush.bf16.msra.mxu0 %v153
  %449 = vmatpush.bf16.msra.mxu0 %v152
  %450 = vmatpush.bf16.msra.mxu0 %v151
  %451 = vmatpush.bf16.msra.mxu0 %v150
  %452 = vmatpush.bf16.msra.mxu0 %v149
  %453 = vmatmul.bf16.gmra.mxu0 %v430
  %v454 = vpop.f32.mrf.mxu0
  %v455 = vadd.f32 %v441, %v454
  %v456 = vpop.f32.mrf.mxu0
  %v457 = vadd.f32 %v443, %v456
  %458 = vdwg.mxu0
  %v459 = vadd.f32 %v427, %v455
  %v460 = vadd.f32 %v428, %v457
  %461 = vst [vmem:[#allocation7] sm:$0xff] %v459
  %462 = vst [vmem:[#allocation7 + $0x8] sm:$0xff] %v460
  %463 = vst.msk [vmem:[#allocation5] sm:$0xff] %vm310, %v371
  %464 = vst.msk [vmem:[#allocation5 + $0x8] sm:$0xff] %vm310, %v372
  // Predicated region
  $region26: #{robust_bart_forward.14} parent=0 // pred_check
    %p465 = pneg %p20
  $region27: #{robust_bart_forward.14} parent=0 // pred_check_branch
    %467 = sbr.rel (%p465) target = $region29
  $region28: #{robust_bart_forward.14} parent=0 // pred_region
    %v468 = vld [vmem:[#allocation4] sm:$0xff]
    %v469 = vld [vmem:[#allocation4 + $0x8] sm:$0xff]
    %v470 = vld [vmem:[#allocation3] sm:$0xff]
    %v471 = vld [vmem:[#allocation3 + $0x8] sm:$0xff]
    %v472 = vrcp.pop %v470
    %v473 = vrcp.pop %v471
    %475 = vset.pattern.permute.xlu0 0
    %476 = vperm.xlu0 %475, %v472
    %v477 = vpop.permute.xlu0 %476
    %480 = vset.pattern.permute.xlu0 0
    %481 = vperm.xlu0 %480, %v473
    %v482 = vpop.permute.xlu0 %481
    %v484 = vmul.f32 %v468, %v477
    %v485 = vmul.f32 %v469, %v482
    %v486 = vld [vmem:[#allocation7] sm:$0xff]
    %v487 = vld [vmem:[#allocation7 + $0x8] sm:$0xff]
    %v488 = vld [vmem:[#allocation6] sm:$0xff]
    %v489 = vld [vmem:[#allocation6 + $0x8] sm:$0xff]
    %v490 = vrcp.pop %v488
    %v491 = vrcp.pop %v489
    %493 = vset.pattern.permute.xlu0 0
    %494 = vperm.xlu0 %493, %v490
    %v495 = vpop.permute.xlu0 %494
    %498 = vset.pattern.permute.xlu0 0
    %499 = vperm.xlu0 %498, %v491
    %v500 = vpop.permute.xlu0 %499
    %v502 = vmul.f32 %v486, %v495
    %v503 = vmul.f32 %v487, %v500
    %v504 = vsub.f32 %v484, %v502
    %v505 = vsub.f32 %v485, %v503
    %v506 = vld [vmem:[%s4] sm:$0xff]
    %v507 = vld [vmem:[%s4 + $0x8] sm:$0xff]
    %509 = vset.pattern.permute.xlu0 0
    %510 = vperm.xlu0 %509, %v506
    %v511 = vpop.permute.xlu0 %510
    %514 = vset.pattern.permute.xlu0 0
    %515 = vperm.xlu0 %514, %v507
    %v516 = vpop.permute.xlu0 %515
    %v518 = vmul.f32 %v504, %v511
    %v519 = vmul.f32 %v505, %v516
    %v520 = vpack.c.bf16 %v518, %v518
    %v521 = vpack.c.bf16 %v519, %v519
    %522 = vst [vmem:[%s5] sm:$0xf] %v520
    %523 = vst [vmem:[%s5 + $0x4] sm:$0xf] %v521
  $region29: #{robust_bart_forward.14} parent=0 // pred_fallthru
    _
  // Predicated region
  $region30: #{robust_bart_forward.14} parent=0 // pred_check
    _
  $region31: #{robust_bart_forward.14} parent=0 // pred_check_branch
    %525 = sbr.rel (0) target = $region33
  $region32: #{robust_bart_forward.14} parent=0 // pred_region
    _
  $region33: #{robust_bart_forward.14} parent=0 // pred_fallthru
    _
  // Predicated region
  $region34: #{robust_bart_forward.14} parent=0 // pred_check
    _
  $region35: #{robust_bart_forward.14} parent=0 // pred_check_branch
    %527 = sbr.rel (0) target = $region37
  $region36: #{robust_bart_forward.14} parent=0 // pred_region
    _
  $region37: #{robust_bart_forward.14} parent=0 // pred_fallthru
    _

// kernel: robust_bart_forward.12
$region0: #{robust_bart_forward.12}
  #allocation0 [shape = 'u32[]', space=smem, size = 0x4, offset = 0x4, fixed_abs, tag = 'smem constant byte address 0x4 - core index']
  #allocation1 [shape = 'u32[72,128]{1,0:T(1,128)}', space=vmem, size = 0x9000, scoped, tag = 'internal scratch']
  %s0 = inlined_call_operand.vmem [shape: f32[16,128], index: 0, kind: input, shape index: {}]
  %s1 = inlined_call_operand.vmem [shape: f32[16,128], index: 1, kind: input, shape index: {}]
  %s2 = inlined_call_operand.vmem [shape: f32[16,128], index: 2, kind: output, shape index: {}]
  %s3 = sld [smem:[#allocation0]]
  $region18: #{robust_bart_forward.12} parent=0
    _
  %s5 = ssub.s32 1, %s3
  %s6 = scalar_select 0, %s5, %s3
  // Predicated region
  $region2: #{robust_bart_forward.12} parent=0 // pred_check
    _
  $region3: #{robust_bart_forward.12} parent=0 // pred_check_branch
    %8 = sbr.rel (0) target = $region5
  $region4: #{robust_bart_forward.12} parent=0 // pred_region
    _
  $region5: #{robust_bart_forward.12} parent=0 // pred_fallthru
    _
  // Predicated region
  $region6: #{robust_bart_forward.12} parent=0 // pred_check
    _
  $region7: #{robust_bart_forward.12} parent=0 // pred_check_branch
    %10 = sbr.rel (0) target = $region9
  $region8: #{robust_bart_forward.12} parent=0 // pred_region
    _
  $region9: #{robust_bart_forward.12} parent=0 // pred_fallthru
    _
  %v11 = vld [vmem:[%s1] sm:$0xff]
  %v12 = vld [vmem:[%s1 + $0x8] sm:$0xff]
  %v13 = vmul.f32 %v11, %v11
  %v14 = vmul.f32 %v12, %v12
  %15 = vadd.xlane.f32.xlu0 %v13
  %v16 = vpop.xlane.xlu0 %15
  %17 = vadd.xlane.f32.xlu0 %v14
  %v18 = vpop.xlane.xlu0 %17
  %v19 = vrsqrt.pop %v16
  %v20 = vmul.f32 %v19, %v16
  %v21 = vmul.f32 %v20, %v19
  %v22 = vmul.f32 0.5, %v21
  %v23 = vsub.f32 1.5, %v22
  %v24 = vmul.f32 %v19, %v23
  %v25 = vmul.f32 %v16, %v24
  %vm26 = vcmp.eq.f32.partialorder %v16, inf
  %v27 = vsel %vm26, %v16, %v25
  %vm28 = vcmp.eq.f32.partialorder %v16, 0.0
  %v29 = vand.u32 %v16, 2147483648
  %v30 = vsel %vm28, %v29, %v27
  %v31 = vrsqrt.pop %v18
  %v32 = vmul.f32 %v31, %v18
  %v33 = vmul.f32 %v32, %v31
  %v34 = vmul.f32 0.5, %v33
  %v35 = vsub.f32 1.5, %v34
  %v36 = vmul.f32 %v31, %v35
  %v37 = vmul.f32 %v18, %v36
  %vm38 = vcmp.eq.f32.partialorder %v18, inf
  %v39 = vsel %vm38, %v18, %v37
  %vm40 = vcmp.eq.f32.partialorder %v18, 0.0
  %v41 = vand.u32 %v18, 2147483648
  %v42 = vsel %vm40, %v41, %v39
  %v43 = vadd.f32 %v30, 1e-12
  %v44 = vadd.f32 %v42, 1e-12
  %v45 = vrcp.pop %v43
  %v46 = vrcp.pop %v44
  %v47 = vld [vmem:[%s0] sm:$0xff]
  %v48 = vld [vmem:[%s0 + $0x8] sm:$0xff]
  %v49 = vmul.f32 %v11, %v45
  %v50 = vmul.f32 %v12, %v46
  %v51 = vadd.f32 %v47, %v49
  %v52 = vadd.f32 %v48, %v50
  %53 = vst [vmem:[%s2] sm:$0xff] %v51
  %54 = vst [vmem:[%s2 + $0x8] sm:$0xff] %v52
  // Predicated region
  $region10: #{robust_bart_forward.12} parent=0 // pred_check
    _
  $region11: #{robust_bart_forward.12} parent=0 // pred_check_branch
    %56 = sbr.rel (0) target = $region13
  $region12: #{robust_bart_forward.12} parent=0 // pred_region
    _
  $region13: #{robust_bart_forward.12} parent=0 // pred_fallthru
    _
  // Predicated region
  $region14: #{robust_bart_forward.12} parent=0 // pred_check
    _
  $region15: #{robust_bart_forward.12} parent=0 // pred_check_branch
    %58 = sbr.rel (0) target = $region17
  $region16: #{robust_bart_forward.12} parent=0 // pred_region
    _
  $region17: #{robust_bart_forward.12} parent=0 // pred_fallthru
    _

</llo_original>
